<compile_context>
chip_gen: v6e
topology: v6e:2x2x1
jax: 0.10.0
libtpu: 0.0.40
codegen_flags: <defaults>
</compile_context>

<pallas_src>
import functools

import numpy as np
import jax
import jax.numpy as jnp
from jax.experimental import pallas as pl
from jax.experimental.pallas import tpu as pltpu

VIRTUAL_ATOM_FEATURE_PLACEHOLDER = -1
VIRTUAL_BOND_FEATURE_PLACEHOLDER = -1

NEG_INF = -1e30  # adjacency-mask value; logits stay f32 so exp underflows to exact 0


def _round_up(x, m):
    return (x + m - 1) // m * m


def _row_tiling(m, max_tile=512):
    """Row-tile size + padded row count (tile multiple of 8, rows multiple of tile)."""
    tm = max_tile if m > max_tile else _round_up(m, 8)
    return tm, _round_up(m, tm)


def _pad_rows(x, rows):
    if x.shape[0] == rows:
        return x
    return jnp.pad(x, ((0, rows - x.shape[0]),) + ((0, 0),) * (x.ndim - 1))


def _vmem_limit_bytes():
    try:
        info = pltpu.get_tpu_info()
        cap = getattr(info, "vmem_capacity_bytes", None)
        if cap:
            return int(cap * 3 // 4)        # leave headroom (v7x: 48 MiB of 64)
    except Exception:
        pass
    return 48 * 1024 * 1024


def _gelu(x):
    # TODO(synk): reference uses exact erf GELU; tanh approximation is used in-kernel
    # (erf lowering in Mosaic is not guaranteed); plain-JAX glue uses exact GELU.
    c = jnp.float32(0.7978845608028654)
    return 0.5 * x * (1.0 + jnp.tanh(c * (x + 0.044715 * x * x * x)))


# ----------------------------- Pallas kernels ------------------------------

def _mlp2_kernel(x_ref, w0_ref, b0_ref, w1_ref, b1_ref, o_ref):
    """(x @ W0 + b0) -> GELU -> (@ W1 + b1); bf16 MXU, f32 accumulation."""
    x = x_ref[...].astype(jnp.bfloat16)
    y = jnp.dot(x, w0_ref[...].astype(jnp.bfloat16),
                preferred_element_type=jnp.float32) + b0_ref[...].astype(jnp.float32)
    y = _gelu(y)
    o_ref[...] = (jnp.dot(y.astype(jnp.bfloat16), w1_ref[...].astype(jnp.bfloat16),
                          preferred_element_type=jnp.float32)
                  + b1_ref[...].astype(jnp.float32)).astype(o_ref.dtype)


def _mlp2_xla(p, x):
    # Tiny-row heads (M = 1..3): plain-JAX is cheaper than a pallas_call launch.
    y = jax.nn.gelu(x @ p["l0"]["w"] + p["l0"]["b"], approximate=False)
    return y @ p["l1"]["w"] + p["l1"]["b"]


def mlp2(p, x, max_tile=512):
    """Fused 2-layer MLP, row-tiled; lane-padded output sliced back. Tiny M -> XLA."""
    M, K = x.shape
    if M < 8:
        return _mlp2_xla(p, x)
    hidden = p["l0"]["w"].shape[1]
    n_out = p["l1"]["w"].shape[1]
    n_pad = _round_up(n_out, 128)
    tm, m_pad = _row_tiling(M, max_tile)
    xp = _pad_rows(x, m_pad)
    w0 = p["l0"]["w"].astype(jnp.bfloat16)
    b0 = p["l0"]["b"].reshape(1, hidden)
    w1, b1 = p["l1"]["w"], p["l1"]["b"]
    if n_pad != n_out:
        w1 = jnp.pad(w1, ((0, 0), (0, n_pad - n_out)))
        b1 = jnp.pad(b1, ((0, n_pad - n_out),))
    w1 = w1.astype(jnp.bfloat16)
    b1 = b1.reshape(1, n_pad)
    out = pl.pallas_call(
        _mlp2_kernel,
        grid=(m_pad // tm,),
        in_specs=[pl.BlockSpec((tm, K), lambda i: (i, 0)),
                  pl.BlockSpec((K, hidden), lambda i: (0, 0)),
                  pl.BlockSpec((1, hidden), lambda i: (0, 0)),
                  pl.BlockSpec((hidden, n_pad), lambda i: (0, 0)),
                  pl.BlockSpec((1, n_pad), lambda i: (0, 0))],
        out_specs=pl.BlockSpec((tm, n_pad), lambda i: (i, 0)),
        out_shape=jax.ShapeDtypeStruct((m_pad, n_pad), jnp.float32),
        compiler_params=pltpu.CompilerParams(dimension_semantics=("parallel",)),
    )(xp, w0, b0, w1, b1)
    return out[:M, :n_out]


def mlp2_stacked(ws, x, max_tile=512):
    """P independent 2-layer MLPs (stacked bf16 weights) on the same x, row-tiled."""
    P, K, hidden = ws["w0"].shape
    O = ws["w1"].shape[2]
    M = x.shape[0]
    tm, m_pad = _row_tiling(M, max_tile)
    xp = _pad_rows(x, m_pad)
    out = pl.pallas_call(
        _mlp2_kernel,
        grid=(P, m_pad // tm),
        in_specs=[pl.BlockSpec((tm, K), lambda p, t: (t, 0)),
                  pl.BlockSpec((None, K, hidden), lambda p, t: (p, 0, 0)),
                  pl.BlockSpec((None, 1, hidden), lambda p, t: (p, 0, 0)),
                  pl.BlockSpec((None, hidden, O), lambda p, t: (p, 0, 0)),
                  pl.BlockSpec((None, 1, O), lambda p, t: (p, 0, 0))],
        out_specs=pl.BlockSpec((None, tm, O), lambda p, t: (p, t, 0)),
        out_shape=jax.ShapeDtypeStruct((P, m_pad, O), jnp.float32),
        compiler_params=pltpu.CompilerParams(dimension_semantics=("parallel", "parallel")),
    )(xp, ws["w0"], ws["b0"], ws["w1"], ws["b1"])
    return out[:, :M, :]


def _embed_triplet_kernel(pn0_ref, pn1_ref, edge_ref, va_m_ref, vb_m_ref,
                          wn_ref, bn_ref, va_emb_ref,
                          we_ref, be_ref, vb_emb_ref,
                          w0a_ref, w0b_ref, b0_ref, w1_ref, b1_ref, o_ref):
    """AtomEmbedding + BondEmbedding + TripletEmbedding.in_proj fused (row tile)."""
    wn = wn_ref[...]
    h0 = jnp.dot(pn0_ref[...], wn, preferred_element_type=jnp.float32) + bn_ref[...]
    h1 = jnp.dot(pn1_ref[...], wn, preferred_element_type=jnp.float32) + bn_ref[...]
    h1 = jnp.where(va_m_ref[...] > 0.0, va_emb_ref[...], h1)       # virtual-atom slot-1 replace
    node_h = h0 + h1                                               # sum over pair dim
    eh = jnp.dot(edge_ref[...], we_ref[...], preferred_element_type=jnp.float32) + be_ref[...]
    eh = jnp.where(vb_m_ref[...] > 0.0, vb_emb_ref[...], eh)       # virtual-bond row replace
    # in_proj first layer on concat([node_h, edge_h]) as split matmul (no concat).
    t = (jnp.dot(node_h.astype(jnp.bfloat16), w0a_ref[...], preferred_element_type=jnp.float32)
         + jnp.dot(eh.astype(jnp.bfloat16), w0b_ref[...], preferred_element_type=jnp.float32)
         + b0_ref[...])
    t = _gelu(t)
    o_ref[...] = (jnp.dot(t.astype(jnp.bfloat16), w1_ref[...], preferred_element_type=jnp.float32)
                  + b1_ref[...]).astype(o_ref.dtype)


def embed_triplet(pn, edge_feats, vatom_mask, vbond_mask, node_p, edge_p, in_proj_p,
                  max_tile=512):
    N = pn.shape[0]
    d_g = node_p["in_proj"]["w"].shape[1]
    tm, n_rows = _row_tiling(N, max_tile)
    pn0 = _pad_rows(pn[:, 0, :], n_rows).astype(jnp.bfloat16)
    pn1 = _pad_rows(pn[:, 1, :], n_rows).astype(jnp.bfloat16)
    ef = _pad_rows(edge_feats, n_rows).astype(jnp.bfloat16)
    vam = _pad_rows(vatom_mask, n_rows)
    vbm = _pad_rows(vbond_mask, n_rows)
    w0 = in_proj_p["l0"]["w"]                       # (2*d_g, d_g)
    args = (pn0, pn1, ef, vam, vbm,
            node_p["in_proj"]["w"].astype(jnp.bfloat16), node_p["in_proj"]["b"].reshape(1, -1),
            node_p["virtual_atom_emb"][0:1],
            edge_p["in_proj"]["w"].astype(jnp.bfloat16), edge_p["in_proj"]["b"].reshape(1, -1),
            edge_p["virtual_bond_emb"][0:1],
            w0[:d_g].astype(jnp.bfloat16), w0[d_g:].astype(jnp.bfloat16),
            in_proj_p["l0"]["b"].reshape(1, -1),
            in_proj_p["l1"]["w"].astype(jnp.bfloat16), in_proj_p["l1"]["b"].reshape(1, -1))
    row_tiled = {0, 1, 2, 3, 4}
    in_specs = []
    for idx, a in enumerate(args):
        if idx in row_tiled:
            in_specs.append(pl.BlockSpec((tm,) + a.shape[1:], lambda i: (i, 0)))
        else:
            in_specs.append(pl.BlockSpec(tuple(a.shape), lambda i: (0, 0)))
    out = pl.pallas_call(
        _embed_triplet_kernel,
        grid=(n_rows // tm,),
        in_specs=in_specs,
        out_specs=pl.BlockSpec((tm, d_g), lambda i: (i, 0)),
        out_shape=jax.ShapeDtypeStruct((n_rows, d_g), jnp.float32),
        compiler_params=pltpu.CompilerParams(dimension_semantics=("parallel",)),
    )(*args)
    return out[:N]


def _edge_bias_kernel(dist_ref, path_ref, dw0_ref, db0_ref, pw0_ref, pb0_ref,
                      w1_ref, b1_ref, o_ref):
    """dist_attn_layer + path_attn_layer fused; second layers merged into one matmul."""
    d = _gelu(jnp.dot(dist_ref[...], dw0_ref[...], preferred_element_type=jnp.float32)
              + db0_ref[...])
    p = _gelu(jnp.dot(path_ref[...], pw0_ref[...], preferred_element_type=jnp.float32)
              + pb0_ref[...])
    h = jnp.concatenate([d, p], axis=-1).astype(jnp.bfloat16)      # (tm, Dd+Dp)
    o_ref[...] = (jnp.dot(h, w1_ref[...], preferred_element_type=jnp.float32)
                  + b1_ref[...]).astype(o_ref.dtype)


def edge_attn_bias(dist_h, path_h, dist_p, path_p, n_heads, max_tile=512):
    E, Dd = dist_h.shape
    Dp = path_h.shape[1]
    n_pad = _round_up(n_heads, 128)   # lane-dense output, sliced below
    tm, e_rows = _row_tiling(E, max_tile)
    dist_h = _pad_rows(dist_h, e_rows).astype(jnp.bfloat16)
    path_h = _pad_rows(path_h, e_rows).astype(jnp.bfloat16)

    def pad_cols(w):
        n = w.shape[1]
        return jnp.pad(w, ((0, 0), (0, n_pad - n))) if n != n_pad else w

    # concat the two output-layer weights so (dist + path) falls out of one contraction
    w1 = jnp.concatenate([pad_cols(dist_p["l1"]["w"]), pad_cols(path_p["l1"]["w"])],
                         axis=0).astype(jnp.bfloat16)                      # (Dd+Dp, n_pad)
    b1 = (jnp.pad(dist_p["l1"]["b"], (0, n_pad - n_heads))
          + jnp.pad(path_p["l1"]["b"], (0, n_pad - n_heads))).reshape(1, n_pad)

    out = pl.pallas_call(
        _edge_bias_kernel,
        grid=(e_rows // tm,),
        in_specs=[pl.BlockSpec((tm, Dd), lambda i: (i, 0)),
                  pl.BlockSpec((tm, Dp), lambda i: (i, 0)),
                  pl.BlockSpec((Dd, Dd), lambda i: (0, 0)),
                  pl.BlockSpec((1, Dd), lambda i: (0, 0)),
                  pl.BlockSpec((Dp, Dp), lambda i: (0, 0)),
                  pl.BlockSpec((1, Dp), lambda i: (0, 0)),
                  pl.BlockSpec((Dd + Dp, n_pad), lambda i: (0, 0)),
                  pl.BlockSpec((1, n_pad), lambda i: (0, 0))],
        out_specs=pl.BlockSpec((tm, n_pad), lambda i: (i, 0)),
        out_shape=jax.ShapeDtypeStruct((e_rows, n_pad), jnp.float32),
        compiler_params=pltpu.CompilerParams(dimension_semantics=("parallel",)),
    )(dist_h, path_h,
      dist_p["l0"]["w"].astype(jnp.bfloat16), dist_p["l0"]["b"].reshape(1, Dd),
      path_p["l0"]["w"].astype(jnp.bfloat16), path_p["l0"]["b"].reshape(1, Dp),
      w1, b1)
    return out[:E, :n_heads]


def _light_layer_kernel(h_in_ref, bias_ref, wqr_ref, wf0_ref, wf1_ref, small_ref, bf0_ref,
                        h_out_ref, *, n_heads, d_g, scale, eps):
    """One full TripletTransformer layer; grid axis = layer index ("arbitrary").

    triplet_h (bf16) lives in the resident output block across layers; per-layer
    weights arrive via layer-stacked pipelined slabs; the (H, dst, src) bias already
    contains the adjacency mask (-1e30 on non-edges).
    small_ref rows: 0 ln1_g, 1 ln1_b, 2 bq, 3 bk, 4 bv, 5 bres, 6 ln2_g, 7 ln2_b, 8 bf1.
    """
    @pl.when(pl.program_id(0) == 0)
    def _():
        h_out_ref[...] = h_in_ref[...]

    h = h_out_ref[...].astype(jnp.float32)            # (N, d_g) resident state
    H = n_heads
    Dh = d_g // H

    ln1_g, ln1_b = small_ref[0:1, :], small_ref[1:2, :]
    bq, bk, bv = small_ref[2:3, :], small_ref[3:4, :], small_ref[4:5, :]
    bres = small_ref[5:6, :]
    ln2_g, ln2_b = small_ref[6:7, :], small_ref[7:8, :]
    bf1 = small_ref[8:9, :]

    def ln(x, g, b):
        mu = jnp.mean(x, axis=-1, keepdims=True)
        var = jnp.mean((x - mu) ** 2, axis=-1, keepdims=True)
        return (x - mu) * jax.lax.rsqrt(var + eps) * g + b

    # ----- attention_norm + QKV: one lane-dense (N, d_g) @ (d_g, 3*d_g) matmul -----
    new_h = ln(h, ln1_g, ln1_b).astype(jnp.bfloat16)
    qkv = jnp.dot(new_h, wqr_ref[:, :3 * d_g], preferred_element_type=jnp.float32)
    q = (qkv[:, 0 * d_g:1 * d_g] + bq) * jnp.float32(scale)
    k = qkv[:, 1 * d_g:2 * d_g] + bk
    v = qkv[:, 2 * d_g:3 * d_g] + bv

    # ----- masked multi-head graph attention (dense edge_softmax over src) -----
    # TODO(synk): for large N (>~512) on v7x, tile dst rows (flash-style) and split
    # work across the 2 TensorCores; full (H, N, N) residency is fine at small N.
    agg_parts = []
    for hh in range(H):
        q_h = q[:, hh * Dh:(hh + 1) * Dh].astype(jnp.bfloat16)
        k_h = k[:, hh * Dh:(hh + 1) * Dh].astype(jnp.bfloat16)
        v_h = v[:, hh * Dh:(hh + 1) * Dh].astype(jnp.bfloat16)
        # logits[dst, src] = K[dst] . Q[src] + dist/path bias (adjacency mask baked in)
        logits = jax.lax.dot_general(k_h, q_h, (((1,), (1,)), ((), ())),
                                     preferred_element_type=jnp.float32)
        logits = logits + bias_ref[hh].astype(jnp.float32)
        m = jnp.max(logits, axis=-1, keepdims=True)
        p = jnp.exp(logits - m)
        # Self-loops guarantee every dst row has >=1 real edge, and exp(-1e30 - m)
        # underflows to exact 0 in f32, so no explicit non-edge select is needed.
        denom = jnp.sum(p, axis=-1, keepdims=True)
        p = p * pl.reciprocal(denom, approx=True)
        agg_parts.append(jnp.dot(p.astype(jnp.bfloat16), v_h,
                                 preferred_element_type=jnp.float32))       # (N, Dh)
    agg = jnp.concatenate(agg_parts, axis=-1)          # (N, d_g) head-major, lane-contiguous

    # ----- Residual: x = h + res_in_proj(agg) (one full-width K=d_g matmul) -----
    x = h + jnp.dot(agg.astype(jnp.bfloat16), wqr_ref[:, 3 * d_g:],
                    preferred_element_type=jnp.float32) + bres

    # ----- Residual FFN: x + MLP(LN(x)) -----
    y = ln(x, ln2_g, ln2_b).astype(jnp.bfloat16)
    y = _gelu(jnp.dot(y, wf0_ref[...], preferred_element_type=jnp.float32) + bf0_ref[...])
    y = jnp.dot(y.astype(jnp.bfloat16), wf1_ref[...], preferred_element_type=jnp.float32) + bf1
    h_out_ref[...] = (x + y).astype(h_out_ref.dtype)


def light_layers(h, bias, lp, *, n_heads, scale, eps=1e-5, vmem_limit=None):
    N, d_g = h.shape
    L = lp["wqr"].shape[0]
    d_ffn = lp["wf0"].shape[2]
    kern = functools.partial(_light_layer_kernel, n_heads=n_heads, d_g=d_g,
                             scale=scale, eps=eps)
    cp = dict(dimension_semantics=("arbitrary",))
    if vmem_limit is not None:
        cp["vmem_limit_bytes"] = int(vmem_limit)
    return pl.pallas_call(
        kern,
        grid=(L,),
        in_specs=[
            pl.BlockSpec((N, d_g), lambda l: (0, 0)),                 # h_in (resident, bf16)
            pl.BlockSpec((n_heads, N, N), lambda l: (0, 0, 0)),       # bias (resident, bf16)
            pl.BlockSpec((None, d_g, 4 * d_g), lambda l: (l, 0, 0)),  # [Wq|Wk|Wv|Wres] slab
            pl.BlockSpec((None, d_g, d_ffn), lambda l: (l, 0, 0)),    # FFN W0
            pl.BlockSpec((None, d_ffn, d_g), lambda l: (l, 0, 0)),    # FFN W1
            pl.BlockSpec((None, 9, d_g), lambda l: (l, 0, 0)),        # LN/bias slab
            pl.BlockSpec((None, 1, d_ffn), lambda l: (l, 0, 0)),      # FFN b0
        ],
        out_specs=pl.BlockSpec((N, d_g), lambda l: (0, 0)),
        out_shape=jax.ShapeDtypeStruct((N, d_g), jnp.bfloat16),
        compiler_params=pltpu.CompilerParams(**cp),
    )(h, bias, lp["wqr"], lp["wf0"], lp["wf1"], lp["small"], lp["bf0"])


# --------------------------- parameter construction -------------------------

def _lin(key, d_in, d_out):
    # nn.Linear init via init_params: weight ~ N(0, 0.02), bias = 0.
    return {"w": 0.02 * jax.random.normal(key, (d_in, d_out), jnp.float32),
            "b": jnp.zeros((d_out,), jnp.float32)}


def _emb(key, n, d):
    return 0.02 * jax.random.normal(key, (n, d), jnp.float32)


def _ln_params(d):
    return {"g": jnp.ones((d,), jnp.float32), "b": jnp.zeros((d,), jnp.float32)}


def init_model_params(key, cfg):
    keys = iter(jax.random.split(key, 64))
    nk = lambda: next(keys)
    d_g = cfg["d_g_feats"]
    d_trip = d_g // cfg["d_hpath_ratio"]
    H = cfg["n_heads"]

    p = {}
    p["node_emb"] = {"in_proj": _lin(nk(), cfg["d_node_feats"], d_g),
                     "virtual_atom_emb": _emb(nk(), 1, d_g)}
    p["edge_emb"] = {"in_proj": _lin(nk(), cfg["d_edge_feats"], d_g),
                     "virtual_bond_emb": _emb(nk(), 1, d_g)}
    p["triplet_emb"] = {
        "in_proj": {"l0": _lin(nk(), 2 * d_g, d_g), "l1": _lin(nk(), d_g, d_g)},
        "fp_proj": {"l0": _lin(nk(), cfg["d_fp_feats"], d_g), "l1": _lin(nk(), d_g, d_g)},
        "md_proj": {"l0": _lin(nk(), cfg["d_md_feats"], d_g), "l1": _lin(nk(), d_g, d_g)},
    }
    p["mask_emb"] = _emb(nk(), 1, d_g)

    light = {
        "path_len_emb": _emb(nk(), cfg["path_length"] + 1, d_g),
        "virtual_path_emb": _emb(nk(), 1, d_g),
        "self_loop_emb": _emb(nk(), 1, d_g),
        "dist_attn_layer": {"l0": _lin(nk(), d_g, d_g), "l1": _lin(nk(), d_g, H)},
        "path_attn_layer": {"l0": _lin(nk(), d_trip, d_trip), "l1": _lin(nk(), d_trip, H)},
        "trip_fortrans": [{"l0": _lin(nk(), d_g, d_trip), "l1": _lin(nk(), d_trip, d_trip)}
                          for _ in range(cfg["path_length"])],
        "layers": [],
    }
    for _ in range(cfg["n_mol_layers"]):
        light["layers"].append({
            "ln1": _ln_params(d_g),
            "qkv": _lin(nk(), d_g, 3 * d_g),
            "res_in_proj": _lin(nk(), d_g, d_g),
            "ln2": _ln_params(d_g),
            "ffn": {"l0": _lin(nk(), d_g, 4 * d_g), "l1": _lin(nk(), 4 * d_g, d_g)},
        })
    p["model"] = light

    p["node_predictor"] = {"l0": _lin(nk(), d_g, d_g), "l1": _lin(nk(), d_g, cfg["n_node_types"])}
    p["fp_predictor"] = {"l0": _lin(nk(), d_g, d_g), "l1": _lin(nk(), d_g, cfg["d_fp_feats"])}
    p["md_predictor"] = {"l0": _lin(nk(), d_g, d_g), "l1": _lin(nk(), d_g, cfg["d_md_feats"])}
    p["cl_projector"] = {"l0": _lin(nk(), 4 * d_g, d_g), "l1": _lin(nk(), d_g, cfg["d_cl_feats"])}
    return p


def _pack_light_layers(layers, d_g):
    """Per-layer weights -> a few large layer-stacked slabs (bf16 weights, f32 biases)."""
    wqr, wf0, wf1, small, bf0 = [], [], [], [], []
    for lp in layers:
        wqr.append(jnp.concatenate([lp["qkv"]["w"], lp["res_in_proj"]["w"]], axis=1))
        wf0.append(lp["ffn"]["l0"]["w"])
        wf1.append(lp["ffn"]["l1"]["w"])
        b = lp["qkv"]["b"]
        small.append(jnp.stack([
            lp["ln1"]["g"], lp["ln1"]["b"],
            b[0:d_g], b[d_g:2 * d_g], b[2 * d_g:3 * d_g],
            lp["res_in_proj"]["b"],
            lp["ln2"]["g"], lp["ln2"]["b"],
            lp["ffn"]["l1"]["b"],
        ], axis=0))
        bf0.append(lp["ffn"]["l0"]["b"].reshape(1, -1))
    return {"wqr": jnp.stack(wqr).astype(jnp.bfloat16),
            "wf0": jnp.stack(wf0).astype(jnp.bfloat16),
            "wf1": jnp.stack(wf1).astype(jnp.bfloat16),
            "small": jnp.stack(small).astype(jnp.float32),
            "bf0": jnp.stack(bf0).astype(jnp.float32)}


def _pack_trip_fortrans(trip_fortrans):
    return {"w0": jnp.stack([t["l0"]["w"] for t in trip_fortrans]).astype(jnp.bfloat16),
            "b0": jnp.stack([t["l0"]["b"].reshape(1, -1) for t in trip_fortrans]),
            "w1": jnp.stack([t["l1"]["w"] for t in trip_fortrans]).astype(jnp.bfloat16),
            "b1": jnp.stack([t["l1"]["b"].reshape(1, -1) for t in trip_fortrans])}


# ------------------------------- forward pass -------------------------------

def light_predictor_forward(params, cfg, graph, fp_1, md_1, fp_2, md_2, fp_3, md_3, ratio):
    d_g = cfg["d_g_feats"]
    H = cfg["n_heads"]
    d_trip = d_g // cfg["d_hpath_ratio"]

    N = graph["num_nodes"]
    indicators = graph["vavn"]          # np.int32 (N,)
    mask_nodes = graph["mask"]          # np.int32 (N,)
    src, dst = graph["src"], graph["dst"]
    path_indices = graph["path"]        # np.int32 (E, path_length)
    vp, sl = graph["vp"], graph["sl"]
    E = src.shape[0]

    # ----- Atom + Bond + Triplet embedding (single fused, row-tiled kernel) -----
    vatom_mask = jnp.asarray((indicators == VIRTUAL_ATOM_FEATURE_PLACEHOLDER)
                             .astype(np.float32))[:, None]
    vbond_mask = jnp.asarray((indicators == VIRTUAL_BOND_FEATURE_PLACEHOLDER)
                             .astype(np.float32))[:, None]
    triplet_h = embed_triplet(graph["begin_end"], graph["edge"], vatom_mask, vbond_mask,
                              params["node_emb"], params["edge_emb"],
                              params["triplet_emb"]["in_proj"])

    # TODO(synk): reference TripletEmbedding signature only covers one (fp, md) pair and
    # no `ratio`; fp_proj / md_proj fill the fp/md virtual nodes (indicators 1/4/7, 2/5/8);
    # ratio nodes (3/6/9) keep in_proj output.
    te = params["triplet_emb"]
    idx147 = np.concatenate([np.where(indicators == v)[0] for v in (1, 4, 7)])
    idx258 = np.concatenate([np.where(indicators == v)[0] for v in (2, 5, 8)])
    idx369 = np.concatenate([np.where(indicators == v)[0] for v in (3, 6, 9)])
    fp_emb = mlp2(te["fp_proj"], jnp.concatenate([fp_1, fp_2, fp_3], axis=0))   # (3, d_g)
    md_emb = mlp2(te["md_proj"], jnp.concatenate([md_1, md_2, md_3], axis=0))   # (3, d_g)
    triplet_h = triplet_h.at[jnp.asarray(idx147)].set(fp_emb)
    triplet_h = triplet_h.at[jnp.asarray(idx258)].set(md_emb)

    # mask-token replacement (triplet_h[mask == 1] = mask_emb.weight)
    masked_eq1 = np.where(mask_nodes == 1)[0]
    if masked_eq1.size:
        triplet_h = triplet_h.at[jnp.asarray(masked_eq1)].set(
            jnp.broadcast_to(params["mask_emb"][0], (masked_eq1.size, d_g)))

    # ----- LiGhT -----
    mp = params["model"]

    # _featurize_path (glue: embedding lookups with host-known masks)
    valid = path_indices >= 0
    path_len = valid.sum(axis=-1).astype(np.int32)
    dist_h = jnp.take(mp["path_len_emb"], jnp.asarray(path_len), axis=0)
    dist_h = jnp.where(jnp.asarray(vp == 1)[:, None], mp["virtual_path_emb"][0][None, :], dist_h)
    dist_h = jnp.where(jnp.asarray(sl == 1)[:, None], mp["self_loop_emb"][0][None, :], dist_h)

    # _init_path: all path_length trip_fortrans MLPs in ONE stacked, row-tiled call
    tf_stacked = _pack_trip_fortrans(mp["trip_fortrans"])
    th_all = mlp2_stacked(tf_stacked, triplet_h)                    # (P, N, d_trip)
    gather_idx = np.where(valid, path_indices, 0).astype(np.int32)
    path_size = valid.sum(axis=-1, keepdims=True).astype(np.float32)
    path_acc = jnp.zeros((E, d_trip), jnp.float32)
    for i in range(cfg["path_length"]):
        contrib = jnp.take(th_all[i], jnp.asarray(gather_idx[:, i]), axis=0)
        path_acc = path_acc + contrib * jnp.asarray(valid[:, i:i + 1].astype(np.float32))
    path_h = path_acc / jnp.asarray(path_size)

    # dist + path attention bias, fused in one row-tiled kernel (lane-dense output)
    edge_bias = edge_attn_bias(dist_h, path_h, mp["dist_attn_layer"], mp["path_attn_layer"], H)

    # dense (H, dst, src) additive bias built directly in bf16 with adjacency mask baked in
    bias_dense = jnp.full((H, N, N), NEG_INF, jnp.bfloat16)
    bias_dense = bias_dense.at[:, jnp.asarray(dst), jnp.asarray(src)].set(
        edge_bias.T.astype(jnp.bfloat16))

    # all transformer layers in ONE pallas_call (layer-stacked, pipelined weight slabs)
    packed_layers = _pack_light_layers(mp["layers"], d_g)
    scale = d_g ** (-0.5)          # matches reference: self.scale = d_feats ** (-0.5)
    triplet_h = light_layers(triplet_h.astype(jnp.bfloat16), bias_dense, packed_layers,
                             n_heads=H, scale=scale, vmem_limit=_vmem_limit_bytes())
    triplet_h = triplet_h.astype(jnp.float32)

    # ----- heads -----
    fp_rows = jnp.take(triplet_h, jnp.asarray(idx147), axis=0)      # (3, d_g)
    md_rows = jnp.take(triplet_h, jnp.asarray(idx258), axis=0)      # (3, d_g)
    ratio_rows = jnp.take(triplet_h, jnp.asarray(idx369), axis=0)   # (3, d_g)
    fp_vn = jnp.mean(fp_rows, axis=0, keepdims=True)
    md_vn = jnp.mean(md_rows, axis=0, keepdims=True)
    ratio_vn = jnp.mean(ratio_rows, axis=0, keepdims=True)
    real_idx = np.where(indicators < 1)[0]                          # nodes left after remove_nodes
    readout = jnp.mean(jnp.take(triplet_h, jnp.asarray(real_idx), axis=0), axis=0, keepdims=True)
    g_feats = jnp.concatenate([fp_vn, md_vn, ratio_vn, readout], axis=-1)   # (1, 4*d_g)

    masked_rows = jnp.take(triplet_h, jnp.asarray(np.where(mask_nodes >= 1)[0]), axis=0)

    node_pred = mlp2(params["node_predictor"], masked_rows)         # Pallas if many masked rows
    fp_pred = mlp2(params["fp_predictor"], fp_rows)                 # tiny M -> XLA path
    md_pred = mlp2(params["md_predictor"], md_rows)
    cl_out = mlp2(params["cl_projector"], g_feats)

    return (node_pred,
            fp_pred[0:1], md_pred[0:1],
            fp_pred[1:2], md_pred[1:2],
            fp_pred[2:3], md_pred[2:3],
            cl_out)


# ------------------------------------ main -----------------------------------

if __name__ == "__main__":
    cfg = dict(d_node_feats=16, d_edge_feats=8, d_g_feats=128, d_cl_feats=64,
               d_fp_feats=64, d_md_feats=32, d_hpath_ratio=1, n_mol_layers=2,
               path_length=5, n_heads=4, n_ffn_dense_layers=2, n_node_types=1)

    key = jax.random.PRNGKey(0)
    k_param, k_data = jax.random.split(key)
    params = init_model_params(k_param, cfg)

    # Single synthetic line graph: 15 real triplet nodes (5 carry the virtual-atom
    # placeholder -1), plus 9 virtual nodes with indicators 1..9 (fp/md/ratio x3).
    n_real = 15
    indicators = np.concatenate([np.full(5, -1, np.int32),
                                 np.zeros(n_real - 5, np.int32),
                                 np.arange(1, 10, dtype=np.int32)])
    N = int(indicators.shape[0])                  # 24
    mask_nodes = np.zeros(N, np.int32)
    mask_nodes[5:13] = 1                          # 8 masked nodes -> exercises Pallas mlp2 head

    # Edges: self-loops on every node, a ring over real nodes, and bidirectional
    # edges between every real node and every virtual node.
    src_l, dst_l, sl_l, vp_l = [], [], [], []
    for i in range(N):
        src_l.append(i); dst_l.append(i); sl_l.append(1); vp_l.append(0)
    for i in range(n_real):
        j = (i + 1) % n_real
        src_l += [i, j]; dst_l += [j, i]; sl_l += [0, 0]; vp_l += [0, 0]
    for vn in range(n_real, N):
        for i in range(n_real):
            src_l += [i, vn]; dst_l += [vn, i]; sl_l += [0, 0]; vp_l += [1, 1]
    src = np.array(src_l, np.int32)
    dst = np.array(dst_l, np.int32)
    sl = np.array(sl_l, np.int32)
    vp = np.array(vp_l, np.int32)
    E = int(src.shape[0])                         # 324

    # Path indices: first slot = src node (guarantees path_size >= 1); ring edges get
    # a second hop; remaining slots use the dataset's -101 filler.
    path = np.full((E, cfg["path_length"]), -101, np.int32)
    path[:, 0] = src
    ring = (sl == 0) & (vp == 0)
    path[ring, 1] = dst[ring]

    graph = dict(
        num_nodes=N, vavn=indicators, mask=mask_nodes,
        src=src, dst=dst, path=path, vp=vp, sl=sl,
        begin_end=jax.random.normal(jax.random.fold_in(k_data, 1),
                                    (N, 2, cfg["d_node_feats"]), jnp.float32),
        edge=jax.random.normal(jax.random.fold_in(k_data, 2),
                               (N, cfg["d_edge_feats"]), jnp.float32),
    )

    fp_1 = jax.random.normal(jax.random.fold_in(k_data, 3), (1, cfg["d_fp_feats"]), jnp.float32)
    md_1 = jax.random.normal(jax.random.fold_in(k_data, 4), (1, cfg["d_md_feats"]), jnp.float32)
    fp_2 = jax.random.normal(jax.random.fold_in(k_data, 5), (1, cfg["d_fp_feats"]), jnp.float32)
    md_2 = jax.random.normal(jax.random.fold_in(k_data, 6), (1, cfg["d_md_feats"]), jnp.float32)
    fp_3 = jax.random.normal(jax.random.fold_in(k_data, 7), (1, cfg["d_fp_feats"]), jnp.float32)
    md_3 = jax.random.normal(jax.random.fold_in(k_data, 8), (1, cfg["d_md_feats"]), jnp.float32)
    ratio = jax.random.normal(jax.random.fold_in(k_data, 9), (1, 3), jnp.float32)

    outs = light_predictor_forward(params, cfg, graph,
                                   fp_1, md_1, fp_2, md_2, fp_3, md_3, ratio)
    jax.block_until_ready(outs)
    print("KERNEL_OK")
</pallas_src>

<mosaic_0001>
module attributes {stable_mosaic.version = 11 : i64} {
  func.func @_embed_triplet_kernel(%arg0: i32, %arg1: memref<24x16xbf16, #tpu.memory_space<vmem>>, %arg2: memref<24x16xbf16, #tpu.memory_space<vmem>>, %arg3: memref<24x8xbf16, #tpu.memory_space<vmem>>, %arg4: memref<24x1xf32, #tpu.memory_space<vmem>>, %arg5: memref<24x1xf32, #tpu.memory_space<vmem>>, %arg6: memref<16x128xbf16, #tpu.memory_space<vmem>>, %arg7: memref<1x128xf32, #tpu.memory_space<vmem>>, %arg8: memref<1x128xf32, #tpu.memory_space<vmem>>, %arg9: memref<8x128xbf16, #tpu.memory_space<vmem>>, %arg10: memref<1x128xf32, #tpu.memory_space<vmem>>, %arg11: memref<1x128xf32, #tpu.memory_space<vmem>>, %arg12: memref<128x128xbf16, #tpu.memory_space<vmem>>, %arg13: memref<128x128xbf16, #tpu.memory_space<vmem>>, %arg14: memref<1x128xf32, #tpu.memory_space<vmem>>, %arg15: memref<128x128xbf16, #tpu.memory_space<vmem>>, %arg16: memref<1x128xf32, #tpu.memory_space<vmem>>, %arg17: memref<24x128xf32, #tpu.memory_space<vmem>>) attributes {dimension_semantics = [#tpu.dimension_semantics<parallel>], iteration_bounds = array<i64: 1>, scalar_prefetch = 0 : i64, scratch_operands = 0 : i64, tpu.core_type = #tpu.core_type<tc>, window_params = [{transform_indices = @transform_0, window_bounds = array<i64: 24, 16>}, {transform_indices = @transform_1, window_bounds = array<i64: 24, 16>}, {transform_indices = @transform_2, window_bounds = array<i64: 24, 8>}, {transform_indices = @transform_3, window_bounds = array<i64: 24, 1>}, {transform_indices = @transform_4, window_bounds = array<i64: 24, 1>}, {pipeline_mode = #tpu.pipeline_mode<synchronous>, transform_indices = @transform_5, window_bounds = array<i64: 16, 128>}, {pipeline_mode = #tpu.pipeline_mode<synchronous>, transform_indices = @transform_6, window_bounds = array<i64: 1, 128>}, {pipeline_mode = #tpu.pipeline_mode<synchronous>, transform_indices = @transform_7, window_bounds = array<i64: 1, 128>}, {pipeline_mode = #tpu.pipeline_mode<synchronous>, transform_indices = @transform_8, window_bounds = array<i64: 8, 128>}, {pipeline_mode = #tpu.pipeline_mode<synchronous>, transform_indices = @transform_9, window_bounds = array<i64: 1, 128>}, {pipeline_mode = #tpu.pipeline_mode<synchronous>, transform_indices = @transform_10, window_bounds = array<i64: 1, 128>}, {pipeline_mode = #tpu.pipeline_mode<synchronous>, transform_indices = @transform_11, window_bounds = array<i64: 128, 128>}, {pipeline_mode = #tpu.pipeline_mode<synchronous>, transform_indices = @transform_12, window_bounds = array<i64: 128, 128>}, {pipeline_mode = #tpu.pipeline_mode<synchronous>, transform_indices = @transform_13, window_bounds = array<i64: 1, 128>}, {pipeline_mode = #tpu.pipeline_mode<synchronous>, transform_indices = @transform_14, window_bounds = array<i64: 128, 128>}, {pipeline_mode = #tpu.pipeline_mode<synchronous>, transform_indices = @transform_15, window_bounds = array<i64: 1, 128>}, {transform_indices = @transform_16, window_bounds = array<i64: 24, 128>}]} {
    %c0 = arith.constant 0 : index
    %c0_0 = arith.constant 0 : index
    %0 = vector.load %arg6[%c0, %c0_0] : memref<16x128xbf16, #tpu.memory_space<vmem>>, vector<16x128xbf16>
    %c0_1 = arith.constant 0 : index
    %c0_2 = arith.constant 0 : index
    %1 = vector.load %arg1[%c0_1, %c0_2] : memref<24x16xbf16, #tpu.memory_space<vmem>>, vector<24x16xbf16>
    %cst = arith.constant dense<0.000000e+00> : vector<24x128xf32>
    %2 = tpu.matmul %1, %0, %cst {dimension_numbers = #tpu.dot_dimension_numbers<[1], [0], [0], [1], [0, 0, 1, 1], [], []>} : vector<24x16xbf16>, vector<16x128xbf16>, vector<24x128xf32> -> vector<24x128xf32>
    %c0_3 = arith.constant 0 : index
    %c0_4 = arith.constant 0 : index
    %3 = vector.load %arg7[%c0_3, %c0_4] : memref<1x128xf32, #tpu.memory_space<vmem>>, vector<1x128xf32>
    %4 = vector.broadcast %3 : vector<1x128xf32> to vector<24x128xf32>
    %5 = arith.addf %2, %4 : vector<24x128xf32>
    %c0_5 = arith.constant 0 : index
    %c0_6 = arith.constant 0 : index
    %6 = vector.load %arg2[%c0_5, %c0_6] : memref<24x16xbf16, #tpu.memory_space<vmem>>, vector<24x16xbf16>
    %cst_7 = arith.constant dense<0.000000e+00> : vector<24x128xf32>
    %7 = tpu.matmul %6, %0, %cst_7 {dimension_numbers = #tpu.dot_dimension_numbers<[1], [0], [0], [1], [0, 0, 1, 1], [], []>} : vector<24x16xbf16>, vector<16x128xbf16>, vector<24x128xf32> -> vector<24x128xf32>
    %c0_8 = arith.constant 0 : index
    %c0_9 = arith.constant 0 : index
    %8 = vector.load %arg7[%c0_8, %c0_9] : memref<1x128xf32, #tpu.memory_space<vmem>>, vector<1x128xf32>
    %9 = vector.broadcast %8 : vector<1x128xf32> to vector<24x128xf32>
    %10 = arith.addf %7, %9 : vector<24x128xf32>
    %c0_10 = arith.constant 0 : index
    %c0_11 = arith.constant 0 : index
    %11 = vector.load %arg4[%c0_10, %c0_11] : memref<24x1xf32, #tpu.memory_space<vmem>>, vector<24x1xf32>
    %cst_12 = arith.constant 0.000000e+00 : f32
    %12 = vector.broadcast %cst_12 : f32 to vector<24x1xf32>
    %13 = arith.cmpf ogt, %11, %12 : vector<24x1xf32>
    %c0_13 = arith.constant 0 : index
    %c0_14 = arith.constant 0 : index
    %14 = vector.load %arg8[%c0_13, %c0_14] : memref<1x128xf32, #tpu.memory_space<vmem>>, vector<1x128xf32>
    %15 = vector.shape_cast %13 : vector<24x1xi1> to vector<24x1xi1>
    %16 = vector.broadcast %15 : vector<24x1xi1> to vector<24x128xi1>
    %17 = vector.shape_cast %14 : vector<1x128xf32> to vector<1x128xf32>
    %18 = vector.broadcast %17 : vector<1x128xf32> to vector<24x128xf32>
    %19 = arith.select %16, %18, %10 : vector<24x128xi1>, vector<24x128xf32>
    %20 = arith.addf %5, %19 : vector<24x128xf32>
    %c0_15 = arith.constant 0 : index
    %c0_16 = arith.constant 0 : index
    %21 = vector.load %arg3[%c0_15, %c0_16] : memref<24x8xbf16, #tpu.memory_space<vmem>>, vector<24x8xbf16>
    %c0_17 = arith.constant 0 : index
    %c0_18 = arith.constant 0 : index
    %22 = vector.load %arg9[%c0_17, %c0_18] : memref<8x128xbf16, #tpu.memory_space<vmem>>, vector<8x128xbf16>
    %cst_19 = arith.constant dense<0.000000e+00> : vector<24x128xf32>
    %23 = tpu.matmul %21, %22, %cst_19 {dimension_numbers = #tpu.dot_dimension_numbers<[1], [0], [0], [1], [0, 0, 1, 1], [], []>} : vector<24x8xbf16>, vector<8x128xbf16>, vector<24x128xf32> -> vector<24x128xf32>
    %c0_20 = arith.constant 0 : index
    %c0_21 = arith.constant 0 : index
    %24 = vector.load %arg10[%c0_20, %c0_21] : memref<1x128xf32, #tpu.memory_space<vmem>>, vector<1x128xf32>
    %25 = vector.broadcast %24 : vector<1x128xf32> to vector<24x128xf32>
    %26 = arith.addf %23, %25 : vector<24x128xf32>
    %c0_22 = arith.constant 0 : index
    %c0_23 = arith.constant 0 : index
    %27 = vector.load %arg5[%c0_22, %c0_23] : memref<24x1xf32, #tpu.memory_space<vmem>>, vector<24x1xf32>
    %cst_24 = arith.constant 0.000000e+00 : f32
    %28 = vector.broadcast %cst_24 : f32 to vector<24x1xf32>
    %29 = arith.cmpf ogt, %27, %28 : vector<24x1xf32>
    %c0_25 = arith.constant 0 : index
    %c0_26 = arith.constant 0 : index
    %30 = vector.load %arg11[%c0_25, %c0_26] : memref<1x128xf32, #tpu.memory_space<vmem>>, vector<1x128xf32>
    %31 = vector.shape_cast %29 : vector<24x1xi1> to vector<24x1xi1>
    %32 = vector.broadcast %31 : vector<24x1xi1> to vector<24x128xi1>
    %33 = vector.shape_cast %30 : vector<1x128xf32> to vector<1x128xf32>
    %34 = vector.broadcast %33 : vector<1x128xf32> to vector<24x128xf32>
    %35 = arith.select %32, %34, %26 : vector<24x128xi1>, vector<24x128xf32>
    %36 = arith.truncf %20 : vector<24x128xf32> to vector<24x128xbf16>
    %c0_27 = arith.constant 0 : index
    %c0_28 = arith.constant 0 : index
    %37 = vector.load %arg12[%c0_27, %c0_28] : memref<128x128xbf16, #tpu.memory_space<vmem>>, vector<128x128xbf16>
    %cst_29 = arith.constant dense<0.000000e+00> : vector<24x128xf32>
    %38 = tpu.matmul %36, %37, %cst_29 {dimension_numbers = #tpu.dot_dimension_numbers<[1], [0], [0], [1], [0, 0, 1, 1], [], []>} : vector<24x128xbf16>, vector<128x128xbf16>, vector<24x128xf32> -> vector<24x128xf32>
    %39 = arith.truncf %35 : vector<24x128xf32> to vector<24x128xbf16>
    %c0_30 = arith.constant 0 : index
    %c0_31 = arith.constant 0 : index
    %40 = vector.load %arg13[%c0_30, %c0_31] : memref<128x128xbf16, #tpu.memory_space<vmem>>, vector<128x128xbf16>
    %cst_32 = arith.constant dense<0.000000e+00> : vector<24x128xf32>
    %41 = tpu.matmul %39, %40, %cst_32 {dimension_numbers = #tpu.dot_dimension_numbers<[1], [0], [0], [1], [0, 0, 1, 1], [], []>} : vector<24x128xbf16>, vector<128x128xbf16>, vector<24x128xf32> -> vector<24x128xf32>
    %42 = arith.addf %38, %41 : vector<24x128xf32>
    %c0_33 = arith.constant 0 : index
    %c0_34 = arith.constant 0 : index
    %43 = vector.load %arg14[%c0_33, %c0_34] : memref<1x128xf32, #tpu.memory_space<vmem>>, vector<1x128xf32>
    %44 = vector.broadcast %43 : vector<1x128xf32> to vector<24x128xf32>
    %45 = arith.addf %42, %44 : vector<24x128xf32>
    %cst_35 = arith.constant 5.000000e-01 : f32
    %46 = vector.broadcast %cst_35 : f32 to vector<24x128xf32>
    %47 = arith.mulf %46, %45 : vector<24x128xf32>
    %cst_36 = arith.constant 4.471500e-02 : f32
    %48 = vector.broadcast %cst_36 : f32 to vector<24x128xf32>
    %49 = arith.mulf %48, %45 : vector<24x128xf32>
    %50 = arith.mulf %49, %45 : vector<24x128xf32>
    %51 = arith.mulf %50, %45 : vector<24x128xf32>
    %52 = arith.addf %45, %51 : vector<24x128xf32>
    %cst_37 = arith.constant 0.797884583 : f32
    %53 = vector.broadcast %cst_37 : f32 to vector<24x128xf32>
    %54 = arith.mulf %53, %52 : vector<24x128xf32>
    %55 = math.tanh %54 : vector<24x128xf32>
    %cst_38 = arith.constant 1.000000e+00 : f32
    %56 = vector.broadcast %cst_38 : f32 to vector<24x128xf32>
    %57 = arith.addf %56, %55 : vector<24x128xf32>
    %58 = arith.mulf %47, %57 : vector<24x128xf32>
    %59 = arith.truncf %58 : vector<24x128xf32> to vector<24x128xbf16>
    %c0_39 = arith.constant 0 : index
    %c0_40 = arith.constant 0 : index
    %60 = vector.load %arg15[%c0_39, %c0_40] : memref<128x128xbf16, #tpu.memory_space<vmem>>, vector<128x128xbf16>
    %cst_41 = arith.constant dense<0.000000e+00> : vector<24x128xf32>
    %61 = tpu.matmul %59, %60, %cst_41 {dimension_numbers = #tpu.dot_dimension_numbers<[1], [0], [0], [1], [0, 0, 1, 1], [], []>} : vector<24x128xbf16>, vector<128x128xbf16>, vector<24x128xf32> -> vector<24x128xf32>
    %c0_42 = arith.constant 0 : index
    %c0_43 = arith.constant 0 : index
    %62 = vector.load %arg16[%c0_42, %c0_43] : memref<1x128xf32, #tpu.memory_space<vmem>>, vector<1x128xf32>
    %63 = vector.broadcast %62 : vector<1x128xf32> to vector<24x128xf32>
    %64 = arith.addf %61, %63 : vector<24x128xf32>
    %c0_44 = arith.constant 0 : index
    %c0_45 = arith.constant 0 : index
    %65 = vector.load %arg17[%c0_44, %c0_45] : memref<24x128xf32, #tpu.memory_space<vmem>>, vector<24x128xf32>
    tpu.vector_store %arg17[%c0_44, %c0_45], %64 {strides = array<i32>} : memref<24x128xf32, #tpu.memory_space<vmem>>, vector<24x128xf32>,
    return
  }
  func.func @transform_0(%arg0: i32) -> (i32, i32) {
    %c0_i32 = arith.constant 0 : i32
    %c0_i32_0 = arith.constant 0 : i32
    return %arg0, %c0_i32 : i32, i32
  }
  func.func @transform_1(%arg0: i32) -> (i32, i32) {
    %c0_i32 = arith.constant 0 : i32
    %c0_i32_0 = arith.constant 0 : i32
    return %arg0, %c0_i32 : i32, i32
  }
  func.func @transform_2(%arg0: i32) -> (i32, i32) {
    %c0_i32 = arith.constant 0 : i32
    %c0_i32_0 = arith.constant 0 : i32
    return %arg0, %c0_i32 : i32, i32
  }
  func.func @transform_3(%arg0: i32) -> (i32, i32) {
    %c0_i32 = arith.constant 0 : i32
    %c0_i32_0 = arith.constant 0 : i32
    return %arg0, %c0_i32 : i32, i32
  }
  func.func @transform_4(%arg0: i32) -> (i32, i32) {
    %c0_i32 = arith.constant 0 : i32
    %c0_i32_0 = arith.constant 0 : i32
    return %arg0, %c0_i32 : i32, i32
  }
  func.func @transform_5(%arg0: i32) -> (i32, i32) {
    %c0_i32 = arith.constant 0 : i32
    %c0_i32_0 = arith.constant 0 : i32
    %c0_i32_1 = arith.constant 0 : i32
    return %c0_i32, %c0_i32_0 : i32, i32
  }
  func.func @transform_6(%arg0: i32) -> (i32, i32) {
    %c0_i32 = arith.constant 0 : i32
    %c0_i32_0 = arith.constant 0 : i32
    %c0_i32_1 = arith.constant 0 : i32
    return %c0_i32, %c0_i32_0 : i32, i32
  }
  func.func @transform_7(%arg0: i32) -> (i32, i32) {
    %c0_i32 = arith.constant 0 : i32
    %c0_i32_0 = arith.constant 0 : i32
    %c0_i32_1 = arith.constant 0 : i32
    return %c0_i32, %c0_i32_0 : i32, i32
  }
  func.func @transform_8(%arg0: i32) -> (i32, i32) {
    %c0_i32 = arith.constant 0 : i32
    %c0_i32_0 = arith.constant 0 : i32
    %c0_i32_1 = arith.constant 0 : i32
    return %c0_i32, %c0_i32_0 : i32, i32
  }
  func.func @transform_9(%arg0: i32) -> (i32, i32) {
    %c0_i32 = arith.constant 0 : i32
    %c0_i32_0 = arith.constant 0 : i32
    %c0_i32_1 = arith.constant 0 : i32
    return %c0_i32, %c0_i32_0 : i32, i32
  }
  func.func @transform_10(%arg0: i32) -> (i32, i32) {
    %c0_i32 = arith.constant 0 : i32
    %c0_i32_0 = arith.constant 0 : i32
    %c0_i32_1 = arith.constant 0 : i32
    return %c0_i32, %c0_i32_0 : i32, i32
  }
  func.func @transform_11(%arg0: i32) -> (i32, i32) {
    %c0_i32 = arith.constant 0 : i32
    %c0_i32_0 = arith.constant 0 : i32
    %c0_i32_1 = arith.constant 0 : i32
    return %c0_i32, %c0_i32_0 : i32, i32
  }
  func.func @transform_12(%arg0: i32) -> (i32, i32) {
    %c0_i32 = arith.constant 0 : i32
    %c0_i32_0 = arith.constant 0 : i32
    %c0_i32_1 = arith.constant 0 : i32
    return %c0_i32, %c0_i32_0 : i32, i32
  }
  func.func @transform_13(%arg0: i32) -> (i32, i32) {
    %c0_i32 = arith.constant 0 : i32
    %c0_i32_0 = arith.constant 0 : i32
    %c0_i32_1 = arith.constant 0 : i32
    return %c0_i32, %c0_i32_0 : i32, i32
  }
  func.func @transform_14(%arg0: i32) -> (i32, i32) {
    %c0_i32 = arith.constant 0 : i32
    %c0_i32_0 = arith.constant 0 : i32
    %c0_i32_1 = arith.constant 0 : i32
    return %c0_i32, %c0_i32_0 : i32, i32
  }
  func.func @transform_15(%arg0: i32) -> (i32, i32) {
    %c0_i32 = arith.constant 0 : i32
    %c0_i32_0 = arith.constant 0 : i32
    %c0_i32_1 = arith.constant 0 : i32
    return %c0_i32, %c0_i32_0 : i32, i32
  }
  func.func @transform_16(%arg0: i32) -> (i32, i32) {
    %c0_i32 = arith.constant 0 : i32
    %c0_i32_0 = arith.constant 0 : i32
    return %arg0, %c0_i32 : i32, i32
  }
}

</mosaic_0001>

<llo_original>
// kernel: tpu_custom_call.1
$region0: #{tpu_custom_call.1}
  #allocation0 [shape = 'u32[]', space=smem, size = 0x4, offset = 0x4, fixed_abs, tag = 'smem constant byte address 0x4 - core index']
  #allocation1 [shape = 'u32[144,128]{1,0:T(1,128)}', space=vmem, size = 0x12000, scoped, tag = 'internal scratch']
  %s0 = inlined_call_operand.vmem [shape: bf16[24,16], index: 0, kind: input, shape index: {}]
  %s1 = inlined_call_operand.vmem [shape: bf16[24,16], index: 1, kind: input, shape index: {}]
  %s2 = inlined_call_operand.vmem [shape: bf16[24,8], index: 2, kind: input, shape index: {}]
  %s3 = inlined_call_operand.vmem [shape: f32[24,1], index: 3, kind: input, shape index: {}]
  %s4 = inlined_call_operand.vmem [shape: f32[24,1], index: 4, kind: input, shape index: {}]
  %s5 = inlined_call_operand.hbm [shape: bf16[16,128], index: 5, kind: input, shape index: {}]
  %s6 = inlined_call_operand.vmem [shape: f32[1,128], index: 6, kind: input, shape index: {}]
  %s7 = inlined_call_operand.hbm [shape: f32[1,128], index: 7, kind: input, shape index: {}]
  %s8 = inlined_call_operand.hbm [shape: bf16[8,128], index: 8, kind: input, shape index: {}]
  %s9 = inlined_call_operand.hbm [shape: f32[1,128], index: 9, kind: input, shape index: {}]
  %s10 = inlined_call_operand.hbm [shape: f32[1,128], index: 10, kind: input, shape index: {}]
  %s11 = inlined_call_operand.vmem [shape: bf16[128,128], index: 11, kind: input, shape index: {}]
  %s12 = inlined_call_operand.hbm [shape: bf16[128,128], index: 12, kind: input, shape index: {}]
  %s13 = inlined_call_operand.hbm [shape: f32[1,128], index: 13, kind: input, shape index: {}]
  %s14 = inlined_call_operand.vmem [shape: bf16[128,128], index: 14, kind: input, shape index: {}]
  %s15 = inlined_call_operand.vmem [shape: f32[1,128], index: 15, kind: input, shape index: {}]
  %s16 = inlined_call_operand.hbm [shape: f32[24,128], index: 16, kind: output, shape index: {}]
  %s17 = sld [smem:[#allocation0]]
  $region102: #{tpu_custom_call.1} parent=0
    _
  %s19 = ssub.s32 1, %s17
  %s20 = scalar_select 0, %s19, %s17
  $region1: #{tpu_custom_call.1} parent=0
    #allocation2 [shape = 'u8[4096]{0}', space=vmem, size = 0x1000, scoped, tag = 'input window, operand 5, single buffered']
    #allocation3 [shape = 's32[1]{0}', space=sflag, size = 0x4, scoped, tag = 'scoped memory for tpu_custom_call.1']
    #allocation4 [shape = 's32[1]{0}', space=sflag, size = 0x4, scoped, tag = 'scoped memory for tpu_custom_call.1']
    #allocation5 [shape = 'u8[512]{0}', space=vmem, size = 0x400, scoped, tag = 'input window, operand 7, single buffered']
    #allocation6 [shape = 's32[1]{0}', space=sflag, size = 0x4, scoped, tag = 'scoped memory for tpu_custom_call.1']
    #allocation7 [shape = 'u8[2048]{0}', space=vmem, size = 0x800, scoped, tag = 'input window, operand 8, single buffered']
    #allocation8 [shape = 'u8[512]{0}', space=vmem, size = 0x400, scoped, tag = 'input window, operand 9, single buffered']
    #allocation9 [shape = 's32[1]{0}', space=sflag, size = 0x4, scoped, tag = 'scoped memory for tpu_custom_call.1']
    #allocation10 [shape = 'u8[512]{0}', space=vmem, size = 0x400, scoped, tag = 'input window, operand 10, single buffered']
    #allocation11 [shape = 'u8[32768]{0}', space=vmem, size = 0x8000, scoped, tag = 'input window, operand 12, single buffered']
    #allocation12 [shape = 's32[1]{0}', space=sflag, size = 0x4, scoped, tag = 'scoped memory for tpu_custom_call.1']
    #allocation13 [shape = 'u8[512]{0}', space=vmem, size = 0x400, scoped, tag = 'input window, operand 13, single buffered']
    #allocation14 [shape = 'u8[12288]{0}', space=vmem, size = 0x3000, scoped, tag = 'output window, operand 0, single buffered']
    %21 = vsyncpa [#allocation3], 0
    %22 = vsyncpa [#allocation6], 0
    %23 = vsyncpa [#allocation9], 0
    %24 = vsyncpa [#allocation12], 0
    %25 = vsyncpa [#allocation4], 0
    // Predicated region
    $region2: #{tpu_custom_call.1} parent=1 // pred_check
      _
    $region3: #{tpu_custom_call.1} parent=1 // pred_check_branch
      %27 = sbr.rel (0) target = $region5
    $region4: #{tpu_custom_call.1} parent=1 // pred_region
      _
    $region5: #{tpu_custom_call.1} parent=1 // pred_fallthru
      _
    // Predicated region
    $region6: #{tpu_custom_call.1} parent=1 // pred_check
      _
    $region7: #{tpu_custom_call.1} parent=1 // pred_check_branch
      %29 = sbr.rel (0) target = $region9
    $region8: #{tpu_custom_call.1} parent=1 // pred_region
      _
    $region9: #{tpu_custom_call.1} parent=1 // pred_fallthru
      _
    // Predicated region
    $region10: #{tpu_custom_call.1} parent=1 // pred_check
      _
    $region11: #{tpu_custom_call.1} parent=1 // pred_check_branch
      %31 = sbr.rel (0) target = $region13
    $region12: #{tpu_custom_call.1} parent=1 // pred_region
      _
    $region13: #{tpu_custom_call.1} parent=1 // pred_fallthru
      _
    // Predicated region
    $region14: #{tpu_custom_call.1} parent=1 // pred_check
      _
    $region15: #{tpu_custom_call.1} parent=1 // pred_check_branch
      %33 = sbr.rel (0) target = $region17
    $region16: #{tpu_custom_call.1} parent=1 // pred_region
      _
    $region17: #{tpu_custom_call.1} parent=1 // pred_fallthru
      _
    // Predicated region
    $region18: #{tpu_custom_call.1} parent=1 // pred_check
      _
    $region19: #{tpu_custom_call.1} parent=1 // pred_check_branch
      %35 = sbr.rel (0) target = $region21
    $region20: #{tpu_custom_call.1} parent=1 // pred_region
      _
    $region21: #{tpu_custom_call.1} parent=1 // pred_fallthru
      _
    // Predicated region
    $region22: #{tpu_custom_call.1} parent=1 // pred_check
      _
    $region23: #{tpu_custom_call.1} parent=1 // pred_check_branch
      %37 = sbr.rel (0) target = $region25
    $region24: #{tpu_custom_call.1} parent=1 // pred_region
      %s39 = ssub.s32 128, 128
      %40 = vsyncadd [#allocation3], %s39
      %s41 = sshll.u32 [#allocation2], 4
      %s42 = int_to_ptr.vmem [resolvable:$true] %s41
      %47 = dma.hbm_to_vmem [thread:$0]  %s5, 128, %s42, [#allocation3], 64, 64, 4
    $region25: #{tpu_custom_call.1} parent=1 // pred_fallthru
      _
    // Predicated region
    $region26: #{tpu_custom_call.1} parent=1 // pred_check
      _
    $region27: #{tpu_custom_call.1} parent=1 // pred_check_branch
      %49 = sbr.rel (0) target = $region29
    $region28: #{tpu_custom_call.1} parent=1 // pred_region
      _
    $region29: #{tpu_custom_call.1} parent=1 // pred_fallthru
      _
    // Predicated region
    $region30: #{tpu_custom_call.1} parent=1 // pred_check
      _
    $region31: #{tpu_custom_call.1} parent=1 // pred_check_branch
      %51 = sbr.rel (0) target = $region33
    $region32: #{tpu_custom_call.1} parent=1 // pred_region
      %s53 = ssub.s32 16, 16
      %54 = vsyncadd [#allocation6], %s53
      %s56 = sshll.u32 [#allocation5], 4
      %s57 = int_to_ptr.vmem [resolvable:$true] %s56
      %59 = dma.hbm_to_vmem [thread:$0]  %s7, 16, %s57, [#allocation6]
    $region33: #{tpu_custom_call.1} parent=1 // pred_fallthru
      _
    // Predicated region
    $region34: #{tpu_custom_call.1} parent=1 // pred_check
      _
    $region35: #{tpu_custom_call.1} parent=1 // pred_check_branch
      %61 = sbr.rel (0) target = $region37
    $region36: #{tpu_custom_call.1} parent=1 // pred_region
      %s63 = ssub.s32 64, 64
      %64 = vsyncadd [#allocation6], %s63
      %s66 = sshll.u32 [#allocation7], 4
      %s67 = int_to_ptr.vmem [resolvable:$true] %s66
      %69 = dma.hbm_to_vmem [thread:$0]  %s8, 64, %s67, [#allocation6]
    $region37: #{tpu_custom_call.1} parent=1 // pred_fallthru
      _
    // Predicated region
    $region38: #{tpu_custom_call.1} parent=1 // pred_check
      _
    $region39: #{tpu_custom_call.1} parent=1 // pred_check_branch
      %71 = sbr.rel (0) target = $region41
    $region40: #{tpu_custom_call.1} parent=1 // pred_region
      %s73 = ssub.s32 16, 16
      %74 = vsyncadd [#allocation9], %s73
      %s76 = sshll.u32 [#allocation8], 4
      %s77 = int_to_ptr.vmem [resolvable:$true] %s76
      %79 = dma.hbm_to_vmem [thread:$0]  %s9, 16, %s77, [#allocation9]
    $region41: #{tpu_custom_call.1} parent=1 // pred_fallthru
      _
    // Predicated region
    $region42: #{tpu_custom_call.1} parent=1 // pred_check
      _
    $region43: #{tpu_custom_call.1} parent=1 // pred_check_branch
      %81 = sbr.rel (0) target = $region45
    $region44: #{tpu_custom_call.1} parent=1 // pred_region
      %s83 = ssub.s32 16, 16
      %84 = vsyncadd [#allocation9], %s83
      %s86 = sshll.u32 [#allocation10], 4
      %s87 = int_to_ptr.vmem [resolvable:$true] %s86
      %89 = dma.hbm_to_vmem [thread:$0]  %s10, 16, %s87, [#allocation9]
    $region45: #{tpu_custom_call.1} parent=1 // pred_fallthru
      _
    // Predicated region
    $region46: #{tpu_custom_call.1} parent=1 // pred_check
      _
    $region47: #{tpu_custom_call.1} parent=1 // pred_check_branch
      %91 = sbr.rel (0) target = $region49
    $region48: #{tpu_custom_call.1} parent=1 // pred_region
      _
    $region49: #{tpu_custom_call.1} parent=1 // pred_fallthru
      _
    // Predicated region
    $region50: #{tpu_custom_call.1} parent=1 // pred_check
      _
    $region51: #{tpu_custom_call.1} parent=1 // pred_check_branch
      %93 = sbr.rel (0) target = $region53
    $region52: #{tpu_custom_call.1} parent=1 // pred_region
      %s95 = ssub.s32 1024, 1024
      %96 = vsyncadd [#allocation12], %s95
      %s97 = sshll.u32 [#allocation11], 4
      %s98 = int_to_ptr.vmem [resolvable:$true] %s97
      %103 = dma.hbm_to_vmem [thread:$0]  %s12, 1024, %s98, [#allocation12], 64, 64, 4
    $region53: #{tpu_custom_call.1} parent=1 // pred_fallthru
      _
    // Predicated region
    $region54: #{tpu_custom_call.1} parent=1 // pred_check
      _
    $region55: #{tpu_custom_call.1} parent=1 // pred_check_branch
      %105 = sbr.rel (0) target = $region57
    $region56: #{tpu_custom_call.1} parent=1 // pred_region
      %s107 = ssub.s32 16, 16
      %108 = vsyncadd [#allocation12], %s107
      %s110 = sshll.u32 [#allocation13], 4
      %s111 = int_to_ptr.vmem [resolvable:$true] %s110
      %113 = dma.hbm_to_vmem [thread:$0]  %s13, 16, %s111, [#allocation12]
    $region57: #{tpu_custom_call.1} parent=1 // pred_fallthru
      _
    // Predicated region
    $region58: #{tpu_custom_call.1} parent=1 // pred_check
      _
    $region59: #{tpu_custom_call.1} parent=1 // pred_check_branch
      %115 = sbr.rel (0) target = $region61
    $region60: #{tpu_custom_call.1} parent=1 // pred_region
      _
    $region61: #{tpu_custom_call.1} parent=1 // pred_fallthru
      _
    // Predicated region
    $region62: #{tpu_custom_call.1} parent=1 // pred_check
      _
    $region63: #{tpu_custom_call.1} parent=1 // pred_check_branch
      %117 = sbr.rel (0) target = $region65
    $region64: #{tpu_custom_call.1} parent=1 // pred_region
      _
    $region65: #{tpu_custom_call.1} parent=1 // pred_fallthru
      _
    // Predicated region
    $region66: #{tpu_custom_call.1} parent=1 // pred_check
      _
    $region67: #{tpu_custom_call.1} parent=1 // pred_check_branch
      %119 = sbr.rel (0) target = $region69
    $region68: #{tpu_custom_call.1} parent=1 // pred_region
      %120 = dma.done [#allocation3], 128
    $region69: #{tpu_custom_call.1} parent=1 // pred_fallthru
      _
    // Predicated region
    $region70: #{tpu_custom_call.1} parent=1 // pred_check
      _
    $region71: #{tpu_custom_call.1} parent=1 // pred_check_branch
      %122 = sbr.rel (0) target = $region73
    $region72: #{tpu_custom_call.1} parent=1 // pred_region
      %123 = dma.done [#allocation6], 16
    $region73: #{tpu_custom_call.1} parent=1 // pred_fallthru
      _
    // Predicated region
    $region74: #{tpu_custom_call.1} parent=1 // pred_check
      _
    $region75: #{tpu_custom_call.1} parent=1 // pred_check_branch
      %125 = sbr.rel (0) target = $region77
    $region76: #{tpu_custom_call.1} parent=1 // pred_region
      %126 = dma.done [#allocation6], 64
    $region77: #{tpu_custom_call.1} parent=1 // pred_fallthru
      _
    // Predicated region
    $region78: #{tpu_custom_call.1} parent=1 // pred_check
      _
    $region79: #{tpu_custom_call.1} parent=1 // pred_check_branch
      %128 = sbr.rel (0) target = $region81
    $region80: #{tpu_custom_call.1} parent=1 // pred_region
      %129 = dma.done [#allocation9], 16
    $region81: #{tpu_custom_call.1} parent=1 // pred_fallthru
      _
    // Predicated region
    $region82: #{tpu_custom_call.1} parent=1 // pred_check
      _
    $region83: #{tpu_custom_call.1} parent=1 // pred_check_branch
      %131 = sbr.rel (0) target = $region85
    $region84: #{tpu_custom_call.1} parent=1 // pred_region
      %132 = dma.done [#allocation9], 16
    $region85: #{tpu_custom_call.1} parent=1 // pred_fallthru
      _
    // Predicated region
    $region86: #{tpu_custom_call.1} parent=1 // pred_check
      _
    $region87: #{tpu_custom_call.1} parent=1 // pred_check_branch
      %134 = sbr.rel (0) target = $region89
    $region88: #{tpu_custom_call.1} parent=1 // pred_region
      %135 = dma.done [#allocation12], 1024
    $region89: #{tpu_custom_call.1} parent=1 // pred_fallthru
      _
    // Predicated region
    $region90: #{tpu_custom_call.1} parent=1 // pred_check
      _
    $region91: #{tpu_custom_call.1} parent=1 // pred_check_branch
      %137 = sbr.rel (0) target = $region93
    $region92: #{tpu_custom_call.1} parent=1 // pred_region
      %138 = dma.done [#allocation12], 16
    $region93: #{tpu_custom_call.1} parent=1 // pred_fallthru
      _
    %v140 = vld [vmem:[#allocation2] sm:$0xf]
    %v141 = vld [vmem:[#allocation2 + $0x4] sm:$0xf]
    %v142 = vld [vmem:[%s0] sm:$0xf]
    %v143 = vld [vmem:[%s0 + $0x4] sm:$0xf]
    %v144 = vld [vmem:[%s0 + $0x8] sm:$0xf]
    %v145 = vld [vmem:[%s6] sm:$0x1]
    %v147 = vlaneseq
    %v148 = vshrl.u32 %v147, 7
    %v149 = vsub.s32 0, %v148
    %v150 = vrot.slane %v145, %v149
    %v155 = vunpack.c.l.b16 %v142
    %v156 = vunpack.c.l.b16 %v143
    %v157 = vunpack.c.l.b16 %v144
    %v158 = vpack.c.b16 %v156, %v155
    %v159 = vpack.c.b16 %v157, %v157
    %v162 = vunpack.c.l.b16 %v140
    %v163 = vunpack.c.l.b16 %v141
    %v164 = vpack.c.b16 %v163, %v162
    %vm166 = vcmask 130048
    %v168 = vsel %vm166, %v158, 0
    %v171 = vsel %vm166, %v159, 0
    %173 = vmatprep.subr.bf16.mxu0 0
    %174 = vmatpush1.bf16.msra.mxu0 0
    %175 = vmatprep.subr.bf16.mxu0 0
    %176 = vmatpush1.bf16.msra.mxu0 0
    %177 = vmatprep.subr.bf16.mxu0 0
    %178 = vmatpush1.bf16.msra.mxu0 0
    %179 = vmatprep.subr.bf16.mxu0 0
    %180 = vmatpush1.bf16.msra.mxu0 0
    %181 = vmatprep.subr.bf16.mxu0 0
    %182 = vmatpush1.bf16.msra.mxu0 0
    %183 = vmatprep.subr.bf16.mxu0 0
    %184 = vmatpush1.bf16.msra.mxu0 0
    %185 = vmatprep.subr.bf16.mxu0 0
    %186 = vmatpush1.bf16.msra.mxu0 0
    %187 = vmatprep.subr.bf16.mxu0 0
    %188 = vmatpush1.bf16.msra.mxu0 %v164
    %189 = vmatprep.subr.bf16.mxu0 0
    %190 = vmatpush2.bf16.msra.mxu0 0
    %191 = vmatprep.subr.bf16.mxu0 0
    %192 = vmatpush2.bf16.msra.mxu0 0
    %193 = vmatprep.subr.bf16.mxu0 0
    %194 = vmatpush2.bf16.msra.mxu0 0
    %195 = vmatprep.subr.bf16.mxu0 0
    %196 = vmatpush2.bf16.msra.mxu0 0
    %197 = vmatprep.subr.bf16.mxu0 0
    %198 = vmatpush2.bf16.msra.mxu0 0
    %199 = vmatprep.subr.bf16.mxu0 0
    %200 = vmatpush2.bf16.msra.mxu0 0
    %201 = vmatprep.subr.bf16.mxu0 0
    %202 = vmatpush2.bf16.msra.mxu0 0
    %203 = vmatprep.subr.bf16.mxu0 0
    %204 = vmatpush2.bf16.msra.mxu0 0
    %205 = vmatprep.mubr.bf16.mxu0 0
    %206 = vmatmul.mubr.bf16.gmra.mxu0 %v168
    %v207 = vpop.f32.mrf.mxu0
    %v208 = vadd.f32 %v150, %v207
    %v209 = vpop.f32.mrf.mxu0
    %v210 = vpop.f32.mrf.mxu0
    %v211 = vadd.f32 %v150, %v210
    %v212 = vpop.f32.mrf.mxu0
    %213 = vmatprep.mubr.bf16.mxu0 0
    %214 = vmatmul.mubr.bf16.gmra.mxu0 %v171
    %v215 = vpop.f32.mrf.mxu0
    %v216 = vadd.f32 %v150, %v215
    %v217 = vpop.f32.mrf.mxu0
    %v218 = vpop.f32.mrf.mxu0
    %v219 = vpop.f32.mrf.mxu0
    %220 = vdwg.mxu0
    %v221 = vld [vmem:[%s1] sm:$0xf]
    %v222 = vld [vmem:[%s1 + $0x4] sm:$0xf]
    %v223 = vld [vmem:[%s1 + $0x8] sm:$0xf]
    %v227 = vunpack.c.l.b16 %v221
    %v228 = vunpack.c.l.b16 %v222
    %v229 = vunpack.c.l.b16 %v223
    %v230 = vpack.c.b16 %v228, %v227
    %v231 = vpack.c.b16 %v229, %v229
    %v233 = vsel %vm166, %v230, 0
    %v236 = vsel %vm166, %v231, 0
    %238 = vmatprep.subr.bf16.mxu0 0
    %239 = vmatpush1.bf16.msra.mxu0 0
    %240 = vmatprep.subr.bf16.mxu0 0
    %241 = vmatpush1.bf16.msra.mxu0 0
    %242 = vmatprep.subr.bf16.mxu0 0
    %243 = vmatpush1.bf16.msra.mxu0 0
    %244 = vmatprep.subr.bf16.mxu0 0
    %245 = vmatpush1.bf16.msra.mxu0 0
    %246 = vmatprep.subr.bf16.mxu0 0
    %247 = vmatpush1.bf16.msra.mxu0 0
    %248 = vmatprep.subr.bf16.mxu0 0
    %249 = vmatpush1.bf16.msra.mxu0 0
    %250 = vmatprep.subr.bf16.mxu0 0
    %251 = vmatpush1.bf16.msra.mxu0 0
    %252 = vmatprep.subr.bf16.mxu0 0
    %253 = vmatpush1.bf16.msra.mxu0 %v164
    %254 = vmatprep.subr.bf16.mxu0 0
    %255 = vmatpush2.bf16.msra.mxu0 0
    %256 = vmatprep.subr.bf16.mxu0 0
    %257 = vmatpush2.bf16.msra.mxu0 0
    %258 = vmatprep.subr.bf16.mxu0 0
    %259 = vmatpush2.bf16.msra.mxu0 0
    %260 = vmatprep.subr.bf16.mxu0 0
    %261 = vmatpush2.bf16.msra.mxu0 0
    %262 = vmatprep.subr.bf16.mxu0 0
    %263 = vmatpush2.bf16.msra.mxu0 0
    %264 = vmatprep.subr.bf16.mxu0 0
    %265 = vmatpush2.bf16.msra.mxu0 0
    %266 = vmatprep.subr.bf16.mxu0 0
    %267 = vmatpush2.bf16.msra.mxu0 0
    %268 = vmatprep.subr.bf16.mxu0 0
    %269 = vmatpush2.bf16.msra.mxu0 0
    %270 = vmatprep.mubr.bf16.mxu0 0
    %271 = vmatmul.mubr.bf16.gmra.mxu0 %v233
    %v272 = vpop.f32.mrf.mxu0
    %v273 = vadd.f32 %v150, %v272
    %v274 = vpop.f32.mrf.mxu0
    %v275 = vpop.f32.mrf.mxu0
    %v276 = vadd.f32 %v150, %v275
    %v277 = vpop.f32.mrf.mxu0
    %278 = vmatprep.mubr.bf16.mxu0 0
    %279 = vmatmul.mubr.bf16.gmra.mxu0 %v236
    %v280 = vpop.f32.mrf.mxu0
    %v281 = vadd.f32 %v150, %v280
    %v282 = vpop.f32.mrf.mxu0
    %v283 = vpop.f32.mrf.mxu0
    %v284 = vpop.f32.mrf.mxu0
    %285 = vdwg.mxu0
    %v286 = vld [vmem:[%s3] sm:$0xff]
    %v287 = vld [vmem:[%s3 + $0x8] sm:$0xff]
    %v288 = vld [vmem:[%s3 + $0x10] sm:$0xff]
    %vm289 = vcmp.gt.f32.partialorder %v286, 0.0
    %vm290 = vcmp.gt.f32.partialorder %v287, 0.0
    %vm291 = vcmp.gt.f32.partialorder %v288, 0.0
    %v292 = vld [vmem:[#allocation5] sm:$0x1]
    %v293 = vsel %vm289, 1, 0
    %v294 = vsel %vm290, 1, 0
    %v295 = vsel %vm291, 1, 0
    %296 = vset.pattern.permute.xlu0 0
    %297 = vperm.xlu0 %296, %v293
    %v298 = vpop.permute.xlu0 %297
    %299 = vset.pattern.permute.xlu0 0
    %300 = vperm.xlu0 %299, %v294
    %v301 = vpop.permute.xlu0 %300
    %302 = vset.pattern.permute.xlu0 0
    %303 = vperm.xlu0 %302, %v295
    %v304 = vpop.permute.xlu0 %303
    %vm305 = vcmp.eq.s32.totalorder %v298, 1
    %vm306 = vcmp.eq.s32.totalorder %v301, 1
    %vm307 = vcmp.eq.s32.totalorder %v304, 1
    %v309 = vlaneseq
    %v310 = vshrl.u32 %v309, 7
    %v311 = vsub.s32 0, %v310
    %v312 = vrot.slane %v292, %v311
    %v314 = vsel %vm305, %v312, %v273
    %v315 = vsel %vm306, %v312, %v276
    %v316 = vsel %vm307, %v312, %v281
    %v317 = vadd.f32 %v208, %v314
    %v318 = vadd.f32 %v211, %v315
    %v319 = vadd.f32 %v216, %v316
    %v320 = vld [vmem:[%s2] sm:$0xf]
    %v321 = vld [vmem:[%s2 + $0x4] sm:$0xf]
    %v322 = vld [vmem:[%s2 + $0x8] sm:$0xf]
    %v323 = vld [vmem:[#allocation7] sm:$0xf]
    %v324 = vld [vmem:[#allocation8] sm:$0x1]
    %v326 = vlaneseq
    %v327 = vshrl.u32 %v326, 7
    %v328 = vsub.s32 0, %v327
    %v329 = vrot.slane %v324, %v328
    %v334 = vunpack.c.l.b16 %v320
    %v335 = vunpack.c.l.b16 %v321
    %v336 = vunpack.c.l.b16 %v322
    %v337 = vpack.c.b16 %v335, %v334
    %v338 = vpack.c.b16 %v336, %v336
    %vm339 = vcmask 64512
    %v341 = vsel %vm339, %v337, 0
    %v344 = vsel %vm339, %v338, 0
    %vm346 = vcmask 1043456
    %v348 = vsel %vm346, %v323, 0
    %350 = vmatprep.subr.bf16.mxu0 0
    %351 = vmatpush1.bf16.msra.mxu0 0
    %352 = vmatprep.subr.bf16.mxu0 0
    %353 = vmatpush1.bf16.msra.mxu0 0
    %354 = vmatprep.subr.bf16.mxu0 0
    %355 = vmatpush1.bf16.msra.mxu0 0
    %356 = vmatprep.subr.bf16.mxu0 0
    %357 = vmatpush1.bf16.msra.mxu0 0
    %358 = vmatprep.subr.bf16.mxu0 0
    %359 = vmatpush1.bf16.msra.mxu0 0
    %360 = vmatprep.subr.bf16.mxu0 0
    %361 = vmatpush1.bf16.msra.mxu0 0
    %362 = vmatprep.subr.bf16.mxu0 0
    %363 = vmatpush1.bf16.msra.mxu0 0
    %364 = vmatprep.subr.bf16.mxu0 0
    %365 = vmatpush1.bf16.msra.mxu0 %v348
    %366 = vmatprep.subr.bf16.mxu0 0
    %367 = vmatpush2.bf16.msra.mxu0 0
    %368 = vmatprep.subr.bf16.mxu0 0
    %369 = vmatpush2.bf16.msra.mxu0 0
    %370 = vmatprep.subr.bf16.mxu0 0
    %371 = vmatpush2.bf16.msra.mxu0 0
    %372 = vmatprep.subr.bf16.mxu0 0
    %373 = vmatpush2.bf16.msra.mxu0 0
    %374 = vmatprep.subr.bf16.mxu0 0
    %375 = vmatpush2.bf16.msra.mxu0 0
    %376 = vmatprep.subr.bf16.mxu0 0
    %377 = vmatpush2.bf16.msra.mxu0 0
    %378 = vmatprep.subr.bf16.mxu0 0
    %379 = vmatpush2.bf16.msra.mxu0 0
    %380 = vmatprep.subr.bf16.mxu0 0
    %381 = vmatpush2.bf16.msra.mxu0 0
    %382 = vmatprep.mubr.bf16.mxu0 0
    %383 = vmatmul.mubr.bf16.gmra.mxu0 %v341
    %v384 = vpop.f32.mrf.mxu0
    %v385 = vadd.f32 %v329, %v384
    %v386 = vpop.f32.mrf.mxu0
    %v387 = vpop.f32.mrf.mxu0
    %v388 = vadd.f32 %v329, %v387
    %v389 = vpop.f32.mrf.mxu0
    %390 = vmatprep.mubr.bf16.mxu0 0
    %391 = vmatmul.mubr.bf16.gmra.mxu0 %v344
    %v392 = vpop.f32.mrf.mxu0
    %v393 = vadd.f32 %v329, %v392
    %v394 = vpop.f32.mrf.mxu0
    %v395 = vpop.f32.mrf.mxu0
    %v396 = vpop.f32.mrf.mxu0
    %397 = vdwg.mxu0
    %v398 = vld [vmem:[%s4] sm:$0xff]
    %v399 = vld [vmem:[%s4 + $0x8] sm:$0xff]
    %v400 = vld [vmem:[%s4 + $0x10] sm:$0xff]
    %vm401 = vcmp.gt.f32.partialorder %v398, 0.0
    %vm402 = vcmp.gt.f32.partialorder %v399, 0.0
    %vm403 = vcmp.gt.f32.partialorder %v400, 0.0
    %v404 = vld [vmem:[#allocation10] sm:$0x1]
    %v405 = vsel %vm401, 1, 0
    %v406 = vsel %vm402, 1, 0
    %v407 = vsel %vm403, 1, 0
    %408 = vset.pattern.permute.xlu0 0
    %409 = vperm.xlu0 %408, %v405
    %v410 = vpop.permute.xlu0 %409
    %411 = vset.pattern.permute.xlu0 0
    %412 = vperm.xlu0 %411, %v406
    %v413 = vpop.permute.xlu0 %412
    %414 = vset.pattern.permute.xlu0 0
    %415 = vperm.xlu0 %414, %v407
    %v416 = vpop.permute.xlu0 %415
    %vm417 = vcmp.eq.s32.totalorder %v410, 1
    %vm418 = vcmp.eq.s32.totalorder %v413, 1
    %vm419 = vcmp.eq.s32.totalorder %v416, 1
    %v421 = vlaneseq
    %v422 = vshrl.u32 %v421, 7
    %v423 = vsub.s32 0, %v422
    %v424 = vrot.slane %v404, %v423
    %v426 = vsel %vm417, %v424, %v385
    %v427 = vsel %vm418, %v424, %v388
    %v428 = vsel %vm419, %v424, %v393
    %v429 = vpack.c.bf16 %v318, %v317
    %v430 = vpack.c.bf16 %v319, %v319
    %v431 = vld [vmem:[%s11] sm:$0xf]
    %v432 = vld [vmem:[%s11 + $0x4] sm:$0xf]
    %v433 = vld [vmem:[%s11 + $0x8] sm:$0xf]
    %v434 = vld [vmem:[%s11 + $0xc] sm:$0xf]
    %v435 = vld [vmem:[%s11 + $0x10] sm:$0xf]
    %v436 = vld [vmem:[%s11 + $0x14] sm:$0xf]
    %v437 = vld [vmem:[%s11 + $0x18] sm:$0xf]
    %v438 = vld [vmem:[%s11 + $0x1c] sm:$0xf]
    %v439 = vld [vmem:[%s11 + $0x20] sm:$0xf]
    %v440 = vld [vmem:[%s11 + $0x24] sm:$0xf]
    %v441 = vld [vmem:[%s11 + $0x28] sm:$0xf]
    %v442 = vld [vmem:[%s11 + $0x2c] sm:$0xf]
    %v443 = vld [vmem:[%s11 + $0x30] sm:$0xf]
    %v444 = vld [vmem:[%s11 + $0x34] sm:$0xf]
    %v445 = vld [vmem:[%s11 + $0x38] sm:$0xf]
    %v446 = vld [vmem:[%s11 + $0x3c] sm:$0xf]
    %v447 = vpack.c.bf16 %v427, %v426
    %v448 = vpack.c.bf16 %v428, %v428
    %v449 = vld [vmem:[#allocation11] sm:$0xf]
    %v450 = vld [vmem:[#allocation11 + $0x4] sm:$0xf]
    %v451 = vld [vmem:[#allocation11 + $0x8] sm:$0xf]
    %v452 = vld [vmem:[#allocation11 + $0xc] sm:$0xf]
    %v453 = vld [vmem:[#allocation11 + $0x10] sm:$0xf]
    %v454 = vld [vmem:[#allocation11 + $0x14] sm:$0xf]
    %v455 = vld [vmem:[#allocation11 + $0x18] sm:$0xf]
    %v456 = vld [vmem:[#allocation11 + $0x1c] sm:$0xf]
    %v457 = vld [vmem:[#allocation11 + $0x20] sm:$0xf]
    %v458 = vld [vmem:[#allocation11 + $0x24] sm:$0xf]
    %v459 = vld [vmem:[#allocation11 + $0x28] sm:$0xf]
    %v460 = vld [vmem:[#allocation11 + $0x2c] sm:$0xf]
    %v461 = vld [vmem:[#allocation11 + $0x30] sm:$0xf]
    %v462 = vld [vmem:[#allocation11 + $0x34] sm:$0xf]
    %v463 = vld [vmem:[#allocation11 + $0x38] sm:$0xf]
    %v464 = vld [vmem:[#allocation11 + $0x3c] sm:$0xf]
    %v481 = vunpack.c.l.b16 %v449
    %v482 = vunpack.c.l.b16 %v450
    %v483 = vunpack.c.l.b16 %v451
    %v484 = vunpack.c.l.b16 %v452
    %v485 = vunpack.c.l.b16 %v453
    %v486 = vunpack.c.l.b16 %v454
    %v487 = vunpack.c.l.b16 %v455
    %v488 = vunpack.c.l.b16 %v456
    %v489 = vunpack.c.l.b16 %v457
    %v490 = vunpack.c.l.b16 %v458
    %v491 = vunpack.c.l.b16 %v459
    %v492 = vunpack.c.l.b16 %v460
    %v493 = vunpack.c.l.b16 %v461
    %v494 = vunpack.c.l.b16 %v462
    %v495 = vunpack.c.l.b16 %v463
    %v496 = vunpack.c.l.b16 %v464
    %v497 = vpack.c.b16 %v482, %v481
    %v498 = vpack.c.b16 %v484, %v483
    %v499 = vpack.c.b16 %v486, %v485
    %v500 = vpack.c.b16 %v488, %v487
    %v501 = vpack.c.b16 %v490, %v489
    %v502 = vpack.c.b16 %v492, %v491
    %v503 = vpack.c.b16 %v494, %v493
    %v504 = vpack.c.b16 %v496, %v495
    %513 = vmatprep.subr.bf16.mxu0 0
    %514 = vmatpush1.bf16.msra.mxu0 %v504
    %515 = vmatprep.subr.bf16.mxu0 0
    %516 = vmatpush1.bf16.msra.mxu0 %v503
    %517 = vmatprep.subr.bf16.mxu0 0
    %518 = vmatpush1.bf16.msra.mxu0 %v502
    %519 = vmatprep.subr.bf16.mxu0 0
    %520 = vmatpush1.bf16.msra.mxu0 %v501
    %521 = vmatprep.subr.bf16.mxu0 0
    %522 = vmatpush1.bf16.msra.mxu0 %v500
    %523 = vmatprep.subr.bf16.mxu0 0
    %524 = vmatpush1.bf16.msra.mxu0 %v499
    %525 = vmatprep.subr.bf16.mxu0 0
    %526 = vmatpush1.bf16.msra.mxu0 %v498
    %527 = vmatprep.subr.bf16.mxu0 0
    %528 = vmatpush1.bf16.msra.mxu0 %v497
    %529 = vmatprep.subr.bf16.mxu0 0
    %530 = vmatpush2.bf16.msra.mxu0 0
    %531 = vmatprep.subr.bf16.mxu0 0
    %532 = vmatpush2.bf16.msra.mxu0 0
    %533 = vmatprep.subr.bf16.mxu0 0
    %534 = vmatpush2.bf16.msra.mxu0 0
    %535 = vmatprep.subr.bf16.mxu0 0
    %536 = vmatpush2.bf16.msra.mxu0 0
    %537 = vmatprep.subr.bf16.mxu0 0
    %538 = vmatpush2.bf16.msra.mxu0 0
    %539 = vmatprep.subr.bf16.mxu0 0
    %540 = vmatpush2.bf16.msra.mxu0 0
    %541 = vmatprep.subr.bf16.mxu0 0
    %542 = vmatpush2.bf16.msra.mxu0 0
    %543 = vmatprep.subr.bf16.mxu0 0
    %544 = vmatpush2.bf16.msra.mxu0 0
    %545 = vmatprep.mubr.bf16.mxu0 0
    %546 = vmatmul.mubr.bf16.gmra.mxu0 %v447
    %v547 = vpop.f32.mrf.mxu0
    %v548 = vadd.f32 0.0, %v547
    %v549 = vpop.f32.mrf.mxu0
    %v550 = vpop.f32.mrf.mxu0
    %v551 = vadd.f32 0.0, %v550
    %v552 = vpop.f32.mrf.mxu0
    %553 = vmatprep.mubr.bf16.mxu0 0
    %554 = vmatmul.mubr.bf16.gmra.mxu0 %v448
    %v555 = vpop.f32.mrf.mxu0
    %v556 = vadd.f32 0.0, %v555
    %v557 = vpop.f32.mrf.mxu0
    %v558 = vpop.f32.mrf.mxu0
    %v559 = vpop.f32.mrf.mxu0
    %560 = vdwg.mxu0
    %v577 = vunpack.c.l.b16 %v431
    %v578 = vunpack.c.l.b16 %v432
    %v579 = vunpack.c.l.b16 %v433
    %v580 = vunpack.c.l.b16 %v434
    %v581 = vunpack.c.l.b16 %v435
    %v582 = vunpack.c.l.b16 %v436
    %v583 = vunpack.c.l.b16 %v437
    %v584 = vunpack.c.l.b16 %v438
    %v585 = vunpack.c.l.b16 %v439
    %v586 = vunpack.c.l.b16 %v440
    %v587 = vunpack.c.l.b16 %v441
    %v588 = vunpack.c.l.b16 %v442
    %v589 = vunpack.c.l.b16 %v443
    %v590 = vunpack.c.l.b16 %v444
    %v591 = vunpack.c.l.b16 %v445
    %v592 = vunpack.c.l.b16 %v446
    %v593 = vpack.c.b16 %v578, %v577
    %v594 = vpack.c.b16 %v580, %v579
    %v595 = vpack.c.b16 %v582, %v581
    %v596 = vpack.c.b16 %v584, %v583
    %v597 = vpack.c.b16 %v586, %v585
    %v598 = vpack.c.b16 %v588, %v587
    %v599 = vpack.c.b16 %v590, %v589
    %v600 = vpack.c.b16 %v592, %v591
    %609 = vmatprep.subr.bf16.mxu0 0
    %610 = vmatpush1.bf16.msra.mxu0 %v600
    %611 = vmatprep.subr.bf16.mxu0 0
    %612 = vmatpush1.bf16.msra.mxu0 %v599
    %613 = vmatprep.subr.bf16.mxu0 0
    %614 = vmatpush1.bf16.msra.mxu0 %v598
    %615 = vmatprep.subr.bf16.mxu0 0
    %616 = vmatpush1.bf16.msra.mxu0 %v597
    %617 = vmatprep.subr.bf16.mxu0 0
    %618 = vmatpush1.bf16.msra.mxu0 %v596
    %619 = vmatprep.subr.bf16.mxu0 0
    %620 = vmatpush1.bf16.msra.mxu0 %v595
    %621 = vmatprep.subr.bf16.mxu0 0
    %622 = vmatpush1.bf16.msra.mxu0 %v594
    %623 = vmatprep.subr.bf16.mxu0 0
    %624 = vmatpush1.bf16.msra.mxu0 %v593
    %625 = vmatprep.subr.bf16.mxu0 0
    %626 = vmatpush2.bf16.msra.mxu0 0
    %627 = vmatprep.subr.bf16.mxu0 0
    %628 = vmatpush2.bf16.msra.mxu0 0
    %629 = vmatprep.subr.bf16.mxu0 0
    %630 = vmatpush2.bf16.msra.mxu0 0
    %631 = vmatprep.subr.bf16.mxu0 0
    %632 = vmatpush2.bf16.msra.mxu0 0
    %633 = vmatprep.subr.bf16.mxu0 0
    %634 = vmatpush2.bf16.msra.mxu0 0
    %635 = vmatprep.subr.bf16.mxu0 0
    %636 = vmatpush2.bf16.msra.mxu0 0
    %637 = vmatprep.subr.bf16.mxu0 0
    %638 = vmatpush2.bf16.msra.mxu0 0
    %639 = vmatprep.subr.bf16.mxu0 0
    %640 = vmatpush2.bf16.msra.mxu0 0
    %641 = vmatprep.mubr.bf16.mxu0 0
    %642 = vmatmul.mubr.bf16.gmra.mxu0 %v429
    %v643 = vpop.f32.mrf.mxu0
    %v644 = vadd.f32 %v548, %v643
    %v645 = vpop.f32.mrf.mxu0
    %v646 = vpop.f32.mrf.mxu0
    %v647 = vadd.f32 %v551, %v646
    %v648 = vpop.f32.mrf.mxu0
    %649 = vmatprep.mubr.bf16.mxu0 0
    %650 = vmatmul.mubr.bf16.gmra.mxu0 %v430
    %v651 = vpop.f32.mrf.mxu0
    %v652 = vadd.f32 %v556, %v651
    %v653 = vpop.f32.mrf.mxu0
    %v654 = vpop.f32.mrf.mxu0
    %v655 = vpop.f32.mrf.mxu0
    %656 = vdwg.mxu0
    %v657 = vld [vmem:[#allocation13] sm:$0x1]
    %v659 = vlaneseq
    %v660 = vshrl.u32 %v659, 7
    %v661 = vsub.s32 0, %v660
    %v662 = vrot.slane %v657, %v661
    %v664 = vadd.f32 %v644, %v662
    %v665 = vadd.f32 %v647, %v662
    %v666 = vadd.f32 %v652, %v662
    %v667 = vmul.f32 %v664, 0.5
    %v668 = vmul.f32 %v665, 0.5
    %v669 = vmul.f32 %v666, 0.5
    %v670 = vmul.f32 %v664, 0.044715
    %v671 = vmul.f32 %v665, 0.044715
    %v672 = vmul.f32 %v666, 0.044715
    %v673 = vmul.f32 %v670, %v664
    %v674 = vmul.f32 %v671, %v665
    %v675 = vmul.f32 %v672, %v666
    %v676 = vmul.f32 %v673, %v664
    %v677 = vmul.f32 %v674, %v665
    %v678 = vmul.f32 %v675, %v666
    %v679 = vadd.f32 %v664, %v676
    %v680 = vadd.f32 %v665, %v677
    %v681 = vadd.f32 %v666, %v678
    %v682 = vmul.f32 %v679, 0.7978846
    %v683 = vmul.f32 %v680, 0.7978846
    %v684 = vmul.f32 %v681, 0.7978846
    %v685 = vtanh.pop %v682
    %v686 = vtanh.pop %v683
    %v687 = vtanh.pop %v684
    %v688 = vadd.f32 %v685, 1.0
    %v689 = vadd.f32 %v686, 1.0
    %v690 = vadd.f32 %v687, 1.0
    %v691 = vmul.f32 %v667, %v688
    %v692 = vmul.f32 %v668, %v689
    %v693 = vmul.f32 %v669, %v690
    %v694 = vpack.c.bf16 %v692, %v691
    %v695 = vpack.c.bf16 %v693, %v693
    %v696 = vld [vmem:[%s14] sm:$0xf]
    %v697 = vld [vmem:[%s14 + $0x4] sm:$0xf]
    %v698 = vld [vmem:[%s14 + $0x8] sm:$0xf]
    %v699 = vld [vmem:[%s14 + $0xc] sm:$0xf]
    %v700 = vld [vmem:[%s14 + $0x10] sm:$0xf]
    %v701 = vld [vmem:[%s14 + $0x14] sm:$0xf]
    %v702 = vld [vmem:[%s14 + $0x18] sm:$0xf]
    %v703 = vld [vmem:[%s14 + $0x1c] sm:$0xf]
    %v704 = vld [vmem:[%s14 + $0x20] sm:$0xf]
    %v705 = vld [vmem:[%s14 + $0x24] sm:$0xf]
    %v706 = vld [vmem:[%s14 + $0x28] sm:$0xf]
    %v707 = vld [vmem:[%s14 + $0x2c] sm:$0xf]
    %v708 = vld [vmem:[%s14 + $0x30] sm:$0xf]
    %v709 = vld [vmem:[%s14 + $0x34] sm:$0xf]
    %v710 = vld [vmem:[%s14 + $0x38] sm:$0xf]
    %v711 = vld [vmem:[%s14 + $0x3c] sm:$0xf]
    %v712 = vld [vmem:[%s15] sm:$0x1]
    %v714 = vlaneseq
    %v715 = vshrl.u32 %v714, 7
    %v716 = vsub.s32 0, %v715
    %v717 = vrot.slane %v712, %v716
    %v735 = vunpack.c.l.b16 %v696
    %v736 = vunpack.c.l.b16 %v697
    %v737 = vunpack.c.l.b16 %v698
    %v738 = vunpack.c.l.b16 %v699
    %v739 = vunpack.c.l.b16 %v700
    %v740 = vunpack.c.l.b16 %v701
    %v741 = vunpack.c.l.b16 %v702
    %v742 = vunpack.c.l.b16 %v703
    %v743 = vunpack.c.l.b16 %v704
    %v744 = vunpack.c.l.b16 %v705
    %v745 = vunpack.c.l.b16 %v706
    %v746 = vunpack.c.l.b16 %v707
    %v747 = vunpack.c.l.b16 %v708
    %v748 = vunpack.c.l.b16 %v709
    %v749 = vunpack.c.l.b16 %v710
    %v750 = vunpack.c.l.b16 %v711
    %v751 = vpack.c.b16 %v736, %v735
    %v752 = vpack.c.b16 %v738, %v737
    %v753 = vpack.c.b16 %v740, %v739
    %v754 = vpack.c.b16 %v742, %v741
    %v755 = vpack.c.b16 %v744, %v743
    %v756 = vpack.c.b16 %v746, %v745
    %v757 = vpack.c.b16 %v748, %v747
    %v758 = vpack.c.b16 %v750, %v749
    %767 = vmatprep.subr.bf16.mxu0 0
    %768 = vmatpush1.bf16.msra.mxu0 %v758
    %769 = vmatprep.subr.bf16.mxu0 0
    %770 = vmatpush1.bf16.msra.mxu0 %v757
    %771 = vmatprep.subr.bf16.mxu0 0
    %772 = vmatpush1.bf16.msra.mxu0 %v756
    %773 = vmatprep.subr.bf16.mxu0 0
    %774 = vmatpush1.bf16.msra.mxu0 %v755
    %775 = vmatprep.subr.bf16.mxu0 0
    %776 = vmatpush1.bf16.msra.mxu0 %v754
    %777 = vmatprep.subr.bf16.mxu0 0
    %778 = vmatpush1.bf16.msra.mxu0 %v753
    %779 = vmatprep.subr.bf16.mxu0 0
    %780 = vmatpush1.bf16.msra.mxu0 %v752
    %781 = vmatprep.subr.bf16.mxu0 0
    %782 = vmatpush1.bf16.msra.mxu0 %v751
    %783 = vmatprep.subr.bf16.mxu0 0
    %784 = vmatpush2.bf16.msra.mxu0 0
    %785 = vmatprep.subr.bf16.mxu0 0
    %786 = vmatpush2.bf16.msra.mxu0 0
    %787 = vmatprep.subr.bf16.mxu0 0
    %788 = vmatpush2.bf16.msra.mxu0 0
    %789 = vmatprep.subr.bf16.mxu0 0
    %790 = vmatpush2.bf16.msra.mxu0 0
    %791 = vmatprep.subr.bf16.mxu0 0
    %792 = vmatpush2.bf16.msra.mxu0 0
    %793 = vmatprep.subr.bf16.mxu0 0
    %794 = vmatpush2.bf16.msra.mxu0 0
    %795 = vmatprep.subr.bf16.mxu0 0
    %796 = vmatpush2.bf16.msra.mxu0 0
    %797 = vmatprep.subr.bf16.mxu0 0
    %798 = vmatpush2.bf16.msra.mxu0 0
    %799 = vmatprep.mubr.bf16.mxu0 0
    %800 = vmatmul.mubr.bf16.gmra.mxu0 %v694
    %v801 = vpop.f32.mrf.mxu0
    %v802 = vadd.f32 %v717, %v801
    %v803 = vpop.f32.mrf.mxu0
    %v804 = vpop.f32.mrf.mxu0
    %v805 = vadd.f32 %v717, %v804
    %v806 = vpop.f32.mrf.mxu0
    %807 = vmatprep.mubr.bf16.mxu0 0
    %808 = vmatmul.mubr.bf16.gmra.mxu0 %v695
    %v809 = vpop.f32.mrf.mxu0
    %v810 = vadd.f32 %v717, %v809
    %v811 = vpop.f32.mrf.mxu0
    %v812 = vpop.f32.mrf.mxu0
    %v813 = vpop.f32.mrf.mxu0
    %814 = vdwg.mxu0
    %815 = vst [vmem:[#allocation14] sm:$0xff] %v802
    %816 = vst [vmem:[#allocation14 + $0x8] sm:$0xff] %v805
    %817 = vst [vmem:[#allocation14 + $0x10] sm:$0xff] %v810
    // Predicated region
    $region94: #{tpu_custom_call.1} parent=1 // pred_check
      _
    $region95: #{tpu_custom_call.1} parent=1 // pred_check_branch
      %819 = sbr.rel (0) target = $region97
    $region96: #{tpu_custom_call.1} parent=1 // pred_region
      %s821 = ssub.s32 384, 384
      %822 = vsyncadd [#allocation4], %s821
      %s823 = sshll.u32 [#allocation14], 4
      %s824 = int_to_ptr.vmem [resolvable:$true] %s823
      %829 = dma.vmem_to_hbm [thread:$0]  %s824, 384, %s16, [#allocation4], 128, 128, 8
    $region97: #{tpu_custom_call.1} parent=1 // pred_fallthru
      _
    // Predicated region
    $region98: #{tpu_custom_call.1} parent=1 // pred_check
      _
    $region99: #{tpu_custom_call.1} parent=1 // pred_check_branch
      %831 = sbr.rel (0) target = $region101
    $region100: #{tpu_custom_call.1} parent=1 // pred_region
      %832 = dma.done [#allocation4], 384
    $region101: #{tpu_custom_call.1} parent=1 // pred_fallthru
      _
    %833 = vsyncpa [#allocation3], 1
    %834 = vsyncpa [#allocation6], 1
    %835 = vsyncpa [#allocation9], 1
    %836 = vsyncpa [#allocation12], 1
    %837 = vsyncpa [#allocation4], 1

</llo_original>
